<compile_context>
chip_gen: v7x
topology: tpu7x:2x2x1
jax: 0.10.0
libtpu: 0.0.40
codegen_flags: <defaults>
</compile_context>

<pallas_src>
import functools
import math

import jax
import jax.numpy as jnp
from jax import lax
from jax.experimental import pallas as pl
from jax.experimental.pallas import tpu as pltpu

F32 = jnp.float32
BF16 = jnp.bfloat16
ACT_DTYPE = BF16            # activations live in HBM as bf16; math in f32.


def _tpu_generation():
    try:
        kind = jax.devices()[0].device_kind.lower()
    except Exception:
        kind = ""
    if "v5 lite" in kind or "v5e" in kind or "v5litepod" in kind:
        return "v5e"
    if "v6" in kind:
        return "v6e"
    if "v7" in kind or "7x" in kind:
        return "v7x"
    return "other"


_GEN = _tpu_generation()
if _GEN in ("v5e", "v6e"):                 # 128 MiB physical VMEM
    VMEM_LIMIT_BYTES = 64 * 1024 * 1024
    SLAB_BUDGET_BYTES = 24 * 1024 * 1024   # double-buffered resident image slab
elif _GEN == "v7x":                        # 64 MiB physical VMEM, 2 TensorCores
    VMEM_LIMIT_BYTES = 40 * 1024 * 1024
    SLAB_BUDGET_BYTES = 12 * 1024 * 1024
else:                                      # unknown generation: conservative
    VMEM_LIMIT_BYTES = 32 * 1024 * 1024
    SLAB_BUDGET_BYTES = 10 * 1024 * 1024

# MXU contraction depth: 128 on v5e, 256 on v6e/v7x -> pack taps when Cin small.
PACK_MAX_CIN = 64 if _GEN == "v5e" else 128

TM_MM = 512                 # matmul row tile
TM_CONV = 256               # direct-conv row tile (flattened output pixels)


def _cparams(sem):
    return pltpu.CompilerParams(dimension_semantics=sem,
                                vmem_limit_bytes=VMEM_LIMIT_BYTES)


def _apply_act(r, act):
    if act == "relu":
        return jnp.maximum(r, 0.0)
    if act == "sigmoid":
        return jax.nn.sigmoid(r)
    if act == "sigmoid2":   # sigmoid(sigmoid(x)): OutConv sigmoid + final sigmoid
        return jax.nn.sigmoid(jax.nn.sigmoid(r))
    return r


# ---------------------------------------------------------------------------
# Generic matmul: (M,K)@(K,N) + bias[N], fused activation.
# bf16 operands, f32 accumulation, exact (un-padded) output via cdiv grids.
# ---------------------------------------------------------------------------
def _mm_kernel(a_ref, b_ref, bias_ref, o_ref, acc_ref, *, act):
    k = pl.program_id(2)

    @pl.when(k == 0)
    def _():
        acc_ref[...] = jnp.zeros_like(acc_ref)

    acc_ref[...] += jnp.dot(a_ref[...], b_ref[...],
                            preferred_element_type=jnp.float32)

    @pl.when(k == pl.num_programs(2) - 1)
    def _():
        r = acc_ref[...] + bias_ref[...]
        o_ref[...] = _apply_act(r, act).astype(o_ref.dtype)


def pallas_matmul(a, b, bias=None, act="none", out_dtype=ACT_DTYPE):
    M, K = a.shape
    K2, N = b.shape
    assert K == K2
    a = a.astype(BF16)
    b = b.astype(BF16)
    if bias is None:
        bias = jnp.zeros((N,), F32)
    bias = bias.reshape(1, N).astype(F32)

    # K tiling without zero-padding the operands whenever possible.
    if K <= 1024:
        tk = K
    elif K % 512 == 0:
        tk = 512
    elif K % 256 == 0:
        tk = 256
    elif K % 128 == 0:
        tk = 128
    else:
        tk = 128
        pad = (-K) % tk
        a = jnp.pad(a, ((0, 0), (0, pad)))
        b = jnp.pad(b, ((0, pad), (0, 0)))
        K += pad

    tm = min(TM_MM, M)
    if N < 128:
        tn = N
    elif N % 256 == 0:
        tn = 256
    else:
        tn = 128

    grid = (pl.cdiv(M, tm), pl.cdiv(N, tn), K // tk)
    return pl.pallas_call(
        functools.partial(_mm_kernel, act=act),
        out_shape=jax.ShapeDtypeStruct((M, N), out_dtype),
        grid=grid,
        in_specs=[pl.BlockSpec((tm, tk), lambda i, j, k: (i, k)),
                  pl.BlockSpec((tk, tn), lambda i, j, k: (k, j)),
                  pl.BlockSpec((1, tn), lambda i, j, k: (0, j))],
        out_specs=pl.BlockSpec((tm, tn), lambda i, j, k: (i, j)),
        scratch_shapes=[pltpu.VMEM((tm, tn), jnp.float32)],
        compiler_params=_cparams(("parallel", "parallel", "arbitrary")),
    )(a, b, bias)


# ---------------------------------------------------------------------------
# Direct (dilated) conv: padded image resident in VMEM as a flat (Hp*Wp, Cin)
# slab.  For Cin <= PACK_MAX_CIN the kh*kw taps are concatenated in VMEM into
# one (tm, kh*kw*Cin) LHS (deep MXU contraction); otherwise the taps are
# accumulated into a VMEM f32 scratch.  BatchNorm partial statistics (masked
# sum / sumsq over the valid output pixels) are emitted as a small extra
# output when requested, so BN never re-reads the conv output from HBM.
# The stored output keeps the padded width Wp; the garbage columns are
# stripped lazily by the BN affine kernel (or a final slice).
# ---------------------------------------------------------------------------
def _dconv_compute(x_ref, w_ref, b_ref, o_ref, acc_ref, *,
                   offsets, act, packed, aligned):
    m = pl.program_id(2)
    tm = o_ref.shape[1]
    base = m * tm
    if packed:
        parts = [x_ref[0, pl.ds(base + off, tm), :] for off in offsets]
        if len(parts) == 1:
            a = parts[0]
        elif aligned:
            a = jnp.concatenate(parts, axis=-1)
        else:
            # sub-128-lane pieces: concatenate in f32 (robust lane packing),
            # then drop back to bf16 for the MXU.
            a = jnp.concatenate([p.astype(jnp.float32) for p in parts],
                                axis=-1).astype(BF16)
        acc_ref[...] = jnp.dot(a, w_ref[...],
                               preferred_element_type=jnp.float32)
    else:
        acc_ref[...] = jnp.dot(x_ref[0, pl.ds(base + offsets[0], tm), :],
                               w_ref[0], preferred_element_type=jnp.float32)
        for t in range(1, len(offsets)):
            acc_ref[...] += jnp.dot(x_ref[0, pl.ds(base + offsets[t], tm), :],
                                    w_ref[t], preferred_element_type=jnp.float32)
    r = acc_ref[...] + b_ref[...]
    o_ref[0] = _apply_act(r, act).astype(o_ref.dtype)
    return r


def _dconv_kernel(x_ref, w_ref, b_ref, o_ref, acc_ref, *,
                  offsets, act, packed, aligned):
    _dconv_compute(x_ref, w_ref, b_ref, o_ref, acc_ref, offsets=offsets,
                   act=act, packed=packed, aligned=aligned)


def _dconv_stats_kernel(x_ref, w_ref, b_ref, mask_ref, o_ref, st_ref, acc_ref, *,
                        offsets, act, packed, aligned):
    r = _dconv_compute(x_ref, w_ref, b_ref, o_ref, acc_ref, offsets=offsets,
                       act=act, packed=packed, aligned=aligned)
    v = mask_ref[...]                               # (tm, 1), 1.0 on valid pixels
    rm = r * v
    st_ref[0, 0:1, :] = jnp.sum(rm, axis=0, keepdims=True)       # sum
    st_ref[0, 1:2, :] = jnp.sum(rm * r, axis=0, keepdims=True)   # sum of squares


def conv2d(x, w, bias=None, padding=(0, 0), dilation=1, act="none",
           want_stats=False, out_dtype=ACT_DTYPE):
    """x: (N,H,W,Cin), w: (kh,kw,Cin,Cout). Stride 1."""
    N, H, W, Cin = x.shape
    kh, kw, _, Cout = w.shape
    ph, pw = padding
    d = dilation
    Ho = H + 2 * ph - d * (kh - 1)
    Wo = W + 2 * pw - d * (kw - 1)
    Wp = W + 2 * pw
    bias_f = jnp.zeros((Cout,), F32) if bias is None else bias.astype(F32)

    M = Ho * Wp
    if Cout < 128:
        tn = Cout
    elif Cout % 256 == 0:
        tn = 256
    else:
        tn = 128
    tm = 128 if tn >= 256 else TM_CONV      # keep the f32 accumulator <= 128 KiB
    tm = min(tm, M)
    grid_m = pl.cdiv(M, tm)
    l_need = grid_m * tm + (kh - 1) * d * Wp + (kw - 1) * d
    hp_ext = -(-l_need // Wp)
    slab_bytes = hp_ext * Wp * max(Cin, 128) * 2   # bf16, lane-padded slab

    use_direct = (Cin >= 8) and (2 * slab_bytes <= SLAB_BUDGET_BYTES)
    if use_direct:
        xp = jnp.pad(x.astype(BF16),
                     ((0, 0), (ph, hp_ext - H - ph), (pw, pw), (0, 0)))
        x_flat = xp.reshape(N, hp_ext * Wp, Cin)
        T = kh * kw
        offsets = tuple(i * d * Wp + j * d
                        for i in range(kh) for j in range(kw))
        packed = (T > 1) and (Cin <= PACK_MAX_CIN)
        aligned = (Cin % 128 == 0)
        if packed:
            w_in = w.astype(BF16).reshape(T * Cin, Cout)
            w_spec = pl.BlockSpec((T * Cin, tn), lambda n, j, m: (0, j))
        else:
            w_in = w.astype(BF16).reshape(T, Cin, Cout)
            w_spec = pl.BlockSpec((T, Cin, tn), lambda n, j, m: (0, 0, j))

        grid = (N, pl.cdiv(Cout, tn), grid_m)
        common = dict(offsets=offsets, act=act, packed=packed, aligned=aligned)
        in_specs = [pl.BlockSpec((1, hp_ext * Wp, Cin), lambda n, j, m: (n, 0, 0)),
                    w_spec,
                    pl.BlockSpec((1, tn), lambda n, j, m: (0, j))]
        inputs = [x_flat, w_in, bias_f.reshape(1, Cout)]
        scratch = [pltpu.VMEM((tm, tn), jnp.float32)]
        cp = _cparams(("parallel", "parallel", "parallel"))

        if want_stats:
            ridx = jnp.arange(grid_m * tm, dtype=jnp.int32)
            valid = (ridx < M) & ((ridx % Wp) < Wo)
            mask = valid.astype(F32).reshape(grid_m * tm, 1)
            in_specs.append(pl.BlockSpec((tm, 1), lambda n, j, m: (m, 0)))
            inputs.append(mask)
            y, st = pl.pallas_call(
                functools.partial(_dconv_stats_kernel, **common),
                out_shape=(jax.ShapeDtypeStruct((N, M, Cout), out_dtype),
                           jax.ShapeDtypeStruct((N * grid_m, 8, Cout), F32)),
                grid=grid,
                in_specs=in_specs,
                out_specs=(
                    pl.BlockSpec((1, tm, tn), lambda n, j, m: (n, m, j)),
                    pl.BlockSpec((1, 8, tn),
                                 lambda n, j, m: (n * grid_m + m, 0, j))),
                scratch_shapes=scratch,
                compiler_params=cp,
            )(*inputs)
            stats = (st[:, 0, :].sum(axis=0), st[:, 1, :].sum(axis=0))
            return y, (Ho, Wp, Wo), stats

        y = pl.pallas_call(
            functools.partial(_dconv_kernel, **common),
            out_shape=jax.ShapeDtypeStruct((N, M, Cout), out_dtype),
            grid=grid,
            in_specs=in_specs,
            out_specs=pl.BlockSpec((1, tm, tn), lambda n, j, m: (n, m, j)),
            scratch_shapes=scratch,
            compiler_params=cp,
        )(*inputs)
        return y.reshape(N, Ho, Wp, Cout)[:, :, :Wo, :]

    # Fallback (tiny Cin or very large spatial slab): classic im2col feeding
    # the matmul kernel (bf16 operands, exact K block).
    xq = jnp.pad(x.astype(BF16), ((0, 0), (ph, ph), (pw, pw), (0, 0)))
    cols = []
    for i in range(kh):
        for j in range(kw):
            cols.append(xq[:, i * d:i * d + Ho, j * d:j * d + Wo, :])
    pat = cols[0] if len(cols) == 1 else jnp.concatenate(cols, axis=-1)
    a2 = pat.reshape(N * Ho * Wo, kh * kw * Cin)
    w2 = w.astype(BF16).reshape(kh * kw * Cin, Cout)
    y = pallas_matmul(a2, w2, bias=bias_f, act=act, out_dtype=out_dtype)
    if want_stats:
        return y.reshape(N, Ho * Wo, Cout), (Ho, Wo, Wo), None
    return y.reshape(N, Ho, Wo, Cout)


# ---------------------------------------------------------------------------
# Training-mode BatchNorm.  Statistics normally arrive fused from the conv;
# the standalone per-block partial-stats kernel is only a fallback for convs
# that took the im2col path.  The affine+activation pass strips the conv's
# padded columns while storing and lane-densifies C<128 levels by packing
# W-pairs (free reshapes at the wrapper boundary).
# ---------------------------------------------------------------------------
def _bnstats_kernel(x_ref, st_ref, *, wo, rows):
    i = pl.program_id(0)
    x = x_ref[...].astype(jnp.float32)                 # (rb, Wp, C)
    rb, wp, _ = x.shape
    rid = lax.broadcasted_iota(jnp.int32, (rb, wp), 0)
    cid = lax.broadcasted_iota(jnp.int32, (rb, wp), 1)
    valid = (rid < (rows - i * rb)) & (cid < wo)
    xm = jnp.where(valid[:, :, None], x, 0.0)
    st_ref[0, 0:1, :] = jnp.sum(xm, axis=(0, 1))[None, :]
    st_ref[0, 1:2, :] = jnp.sum(xm * xm, axis=(0, 1))[None, :]


def _bn_partial_stats(x3, wo, rows):
    Wp, C = x3.shape[1], x3.shape[2]
    row_bytes = Wp * max(C, 128) * 2
    rb = max(1, min(rows, (3 * 1024 * 1024) // row_bytes))
    grid = pl.cdiv(rows, rb)
    st = pl.pallas_call(
        functools.partial(_bnstats_kernel, wo=wo, rows=rows),
        out_shape=jax.ShapeDtypeStruct((grid, 8, C), F32),
        grid=(grid,),
        in_specs=[pl.BlockSpec((rb, Wp, C), lambda i: (i, 0, 0))],
        out_specs=pl.BlockSpec((1, 8, C), lambda i: (i, 0, 0)),
        compiler_params=_cparams(("parallel",)),
    )(x3)
    return st[:, 0, :].sum(axis=0), st[:, 1, :].sum(axis=0)


def _bnaffine_kernel(x_ref, a_ref, b_ref, o_ref, *, act, wo):
    x = x_ref[:, :wo, :].astype(jnp.float32)
    r = x * a_ref[...][None] + b_ref[...][None]
    o_ref[...] = _apply_act(r, act).astype(o_ref.dtype)


def bn_act_padded(y_pad, layout, n_batch, gamma, beta, act="relu", eps=1e-5,
                  stats=None, out_dtype=ACT_DTYPE):
    Ho, Wp, Wo = layout
    C = y_pad.shape[-1]
    rows = n_batch * Ho
    x3 = y_pad.reshape(rows, Wp, C)

    if stats is None:
        s, ss = _bn_partial_stats(x3, Wo, rows)
    else:
        s, ss = stats
    cnt = float(n_batch * Ho * Wo)
    mean = s / cnt
    var = jnp.maximum(ss / cnt - mean * mean, 0.0)   # clamp cancellation noise
    scale = gamma.astype(F32) / jnp.sqrt(var + eps)
    shift = beta.astype(F32) - mean * scale

    # Lane-densify narrow-channel levels by packing W-pairs (pure reshapes).
    pk = 2 if (C < 128 and Wp % 2 == 0 and Wo % 2 == 0) else 1
    Wp_e, Wo_e, C_e = Wp // pk, Wo // pk, C * pk
    x3e = x3.reshape(rows, Wp_e, C_e)
    scale_e = jnp.tile(scale, pk).reshape(1, C_e)
    shift_e = jnp.tile(shift, pk).reshape(1, C_e)

    row_bytes = Wp_e * max(C_e, 128) * 2
    rb = max(1, min(rows, (3 * 1024 * 1024) // row_bytes))
    out = pl.pallas_call(
        functools.partial(_bnaffine_kernel, act=act, wo=Wo_e),
        out_shape=jax.ShapeDtypeStruct((rows, Wo_e, C_e), out_dtype),
        grid=(pl.cdiv(rows, rb),),
        in_specs=[pl.BlockSpec((rb, Wp_e, C_e), lambda i: (i, 0, 0)),
                  pl.BlockSpec((1, C_e), lambda i: (0, 0)),
                  pl.BlockSpec((1, C_e), lambda i: (0, 0))],
        out_specs=pl.BlockSpec((rb, Wo_e, C_e), lambda i: (i, 0, 0)),
        compiler_params=_cparams(("parallel",)),
    )(x3e, scale_e, shift_e)
    return out.reshape(n_batch, Ho, Wo, C)


# ---------------------------------------------------------------------------
# Single-pass 2x2 / stride-2 max-pool (reads x exactly once, lane-dense).
# ---------------------------------------------------------------------------
def _pool_kernel(x_ref, o_ref, *, c):
    x = x_ref[0].astype(jnp.float32)                   # (rb, 2, Wo, 2c)
    y = jnp.maximum(x[:, 0], x[:, 1])                  # pair of rows
    o_ref[0] = jnp.maximum(y[..., :c], y[..., c:]).astype(o_ref.dtype)


def maxpool2(x):
    N, H, W, C = x.shape
    Ho, Wo = H // 2, W // 2
    x = x[:, :2 * Ho, :2 * Wo, :]
    x5 = x.reshape(N, Ho, 2, Wo, 2 * C)                # free reshape
    row_bytes = 2 * Wo * max(2 * C, 128) * 2
    rb = max(1, min(Ho, (4 * 1024 * 1024) // row_bytes))
    return pl.pallas_call(
        functools.partial(_pool_kernel, c=C),
        out_shape=jax.ShapeDtypeStruct((N, Ho, Wo, C), x.dtype),
        grid=(N, pl.cdiv(Ho, rb)),
        in_specs=[pl.BlockSpec((1, rb, 2, Wo, 2 * C),
                               lambda n, i: (n, i, 0, 0, 0))],
        out_specs=pl.BlockSpec((1, rb, Wo, C), lambda n, i: (n, i, 0, 0)),
        compiler_params=_cparams(("parallel", "parallel")),
    )(x5)


# ---------------------------------------------------------------------------
# Lane-dense elementwise kernels: binary add/mul and the fused spatial
# attention combine x * (y1 + y3 + y5 + y7).
# ---------------------------------------------------------------------------
def _flatten_lane(shape):
    total = math.prod(shape)
    lane = next((c for c in (1024, 512, 256, 128) if total % c == 0), shape[-1])
    return total // lane, lane


def _binop_kernel(x_ref, y_ref, o_ref, *, op):
    x = x_ref[...].astype(jnp.float32)
    y = y_ref[...].astype(jnp.float32)
    r = x + y if op == "add" else x * y
    o_ref[...] = r.astype(o_ref.dtype)


def pallas_binop(x, y, op, out_dtype=ACT_DTYPE):
    assert x.shape == y.shape
    shape = x.shape
    rows, lane = _flatten_lane(shape)
    x2 = x.reshape(rows, lane)
    y2 = y.reshape(rows, lane)
    rb = max(1, min(rows, (2 * 1024 * 1024) // (lane * 2)))
    out = pl.pallas_call(
        functools.partial(_binop_kernel, op=op),
        out_shape=jax.ShapeDtypeStruct((rows, lane), out_dtype),
        grid=(pl.cdiv(rows, rb),),
        in_specs=[pl.BlockSpec((rb, lane), lambda i: (i, 0)),
                  pl.BlockSpec((rb, lane), lambda i: (i, 0))],
        out_specs=pl.BlockSpec((rb, lane), lambda i: (i, 0)),
        compiler_params=_cparams(("parallel",)),
    )(x2, y2)
    return out.reshape(shape)


def _satt_combine_kernel(x_ref, y0_ref, y1_ref, y2_ref, y3_ref, o_ref):
    s = (y0_ref[...].astype(jnp.float32) + y1_ref[...].astype(jnp.float32)
         + y2_ref[...].astype(jnp.float32) + y3_ref[...].astype(jnp.float32))
    o_ref[...] = (x_ref[...].astype(jnp.float32) * s).astype(o_ref.dtype)


def satt_combine(x, ys, out_dtype=ACT_DTYPE):
    shape = x.shape
    rows, lane = _flatten_lane(shape)
    flat = [t.reshape(rows, lane) for t in (x, *ys)]
    rb = max(1, min(rows, (1024 * 1024) // (lane * 2)))
    spec = pl.BlockSpec((rb, lane), lambda i: (i, 0))
    out = pl.pallas_call(
        _satt_combine_kernel,
        out_shape=jax.ShapeDtypeStruct((rows, lane), out_dtype),
        grid=(pl.cdiv(rows, rb),),
        in_specs=[spec] * 5,
        out_specs=spec,
        compiler_params=_cparams(("parallel",)),
    )(*flat)
    return out.reshape(shape)


# ---------------------------------------------------------------------------
# Fused channel attention: out = x * sigmoid(relu(x @ w1) @ w2).
# Both weight matrices stay resident in VMEM; the hidden/gate tensors never
# touch HBM.  (AvgPool2d(1) in the reference module is the identity.)
# ---------------------------------------------------------------------------
def _chatt_kernel(x_ref, w1_ref, w2_ref, o_ref):
    x = x_ref[...]
    h = jnp.dot(x, w1_ref[...], preferred_element_type=jnp.float32)
    h = jnp.maximum(h, 0.0).astype(BF16)
    g = jax.nn.sigmoid(jnp.dot(h, w2_ref[...],
                               preferred_element_type=jnp.float32))
    o_ref[...] = (x.astype(jnp.float32) * g).astype(o_ref.dtype)


def channel_attention(x, p):
    N, H, W, C = x.shape
    x2 = x.reshape(-1, C).astype(BF16)
    M = x2.shape[0]
    tm = min(128 if C >= 512 else 256, M)
    out = pl.pallas_call(
        _chatt_kernel,
        out_shape=jax.ShapeDtypeStruct((M, C), ACT_DTYPE),
        grid=(pl.cdiv(M, tm),),
        in_specs=[pl.BlockSpec((tm, C), lambda i: (i, 0)),
                  pl.BlockSpec((C, C), lambda i: (0, 0)),
                  pl.BlockSpec((C, C), lambda i: (0, 0))],
        out_specs=pl.BlockSpec((tm, C), lambda i: (i, 0)),
        compiler_params=_cparams(("parallel",)),
    )(x2, p["w1"].astype(BF16), p["w2"].astype(BF16))
    return out.reshape(N, H, W, C)


# ---------------------------------------------------------------------------
# Layer helpers
# ---------------------------------------------------------------------------
def conv_bn(x, p):
    """Conv module: 3x3 conv (no bias) + BatchNorm (batch stats) + ReLU."""
    y, layout, stats = conv2d(x, p["w"], padding=(1, 1), want_stats=True)
    return bn_act_padded(y, layout, x.shape[0], p["gamma"], p["beta"],
                         act="relu", stats=stats)


def first_half_encoder(x, p):
    return conv_bn(maxpool2(x), p)


def conv_transpose_2x2_s2_p2(x, w, bias):
    """ConvTranspose2d(k=2, stride=2, padding=2); w: (Cin,2,2,Cout)."""
    N, H, W, Cin = x.shape
    Cout = w.shape[-1]
    y = pallas_matmul(x.reshape(-1, Cin), w.reshape(Cin, 4 * Cout),
                      bias=jnp.tile(bias.astype(F32), 4))
    # TODO(synk): pixel interleave + padding crop stay as XLA data movement; a
    # pre-interleaved kernel store needs in-kernel relayouts (W not always %8).
    y = y.reshape(N, H, W, 2, 2, Cout).transpose(0, 1, 3, 2, 4, 5)
    return y.reshape(N, 2 * H, 2 * W, Cout)[:, 2:-2, 2:-2, :]


def spatial_attention(x, p):
    # Upsample target equals the module input's spatial size by construction.
    N, H, W, C2 = x.shape
    ys = []
    for d, br in zip((1, 3, 5, 7), p["branches"]):
        y, layout, stats = conv2d(x, br["w3"], padding=(1, 1), dilation=d,
                                  want_stats=True)
        y = bn_act_padded(y, layout, N, br["gamma"], br["beta"], act="relu",
                          stats=stats)
        Hb, Wb = y.shape[1], y.shape[2]
        y = pallas_matmul(y.reshape(-1, C2), br["w1"]).reshape(N, Hb, Wb, C2)
        # TODO(synk): bilinear resampling (nn.Upsample align_corners=False)
        # stays in plain JAX; no clean Pallas equivalent for the gather/interp.
        y = jax.image.resize(y.astype(F32), (N, H, W, C2),
                             method="bilinear").astype(ACT_DTYPE)
        ys.append(y)
    return satt_combine(x, ys)           # x * (y1 + y3 + y5 + y7), one pass


def fusion_block(x1, x2, p):
    x1 = channel_attention(x1, p["ca1"])
    x2 = channel_attention(x2, p["ca2"])
    x = jnp.concatenate([x1, x2], axis=-1)
    x = spatial_attention(x, p["sp"])
    return conv_bn(x, p["out"])


def decoder_fwd(x1, x2, p):
    x1 = conv_bn(x1, p["conv1"])
    dY = x2.shape[1] - x1.shape[1]
    dX = x2.shape[2] - x1.shape[2]
    x1 = jnp.pad(x1, ((0, 0), (dY // 2, dY - dY // 2),
                      (dX // 2, dX - dX // 2), (0, 0)))
    xc = jnp.concatenate([x2, x1], axis=-1)        # torch.cat([x2, x1], dim=1)
    xc = conv_bn(xc, p["conv2"])
    return conv_transpose_2x2_s2_p2(xc, p["up_w"], p["up_b"])


def nearest_resize(x, out_h, out_w):
    # PyTorch nn.Upsample default 'nearest': src = floor(dst * in / out).
    N, H, W, C = x.shape
    ih = (jnp.arange(out_h) * H) // out_h
    iw = (jnp.arange(out_w) * W) // out_w
    return x[:, ih][:, :, iw]


def out_head(x, p, output_size):
    # OutConv: Conv2d(k=(2,1), padding=(4,3)) + sigmoid, nearest upsample, then
    # the model sigmoids again.  Both sigmoids commute with the nearest gather,
    # so they are fused into the conv epilogue ("sigmoid2").  n_classes is
    # padded to 128 lanes (unmasked stores, full MXU lanes) and sliced after.
    w, b = p["w"], p["b"]
    nc = w.shape[-1]
    ncp = 128
    wp = jnp.zeros(w.shape[:-1] + (ncp,), BF16).at[..., :nc].set(w.astype(BF16))
    bp = jnp.zeros((ncp,), F32).at[:nc].set(b.astype(F32))
    y = conv2d(x, wp, bias=bp, padding=(4, 3), act="sigmoid2", out_dtype=F32)
    y = y[..., :nc]
    return nearest_resize(y, output_size, output_size)


# ---------------------------------------------------------------------------
# Parameters (deterministic init; conv/attention weights stored in bf16)
# ---------------------------------------------------------------------------
def make_params(n_channels, n_classes=1):
    keys = iter(jax.random.split(jax.random.PRNGKey(0), 1024))

    def rnd(shape, fan, dtype=BF16):
        return ((1.0 / (fan ** 0.5)) *
                jax.random.normal(next(keys), shape, F32)).astype(dtype)

    def conv_w(kh, kw, cin, cout):
        return rnd((kh, kw, cin, cout), kh * kw * cin)

    def convbn(cin, cout):
        return {"w": conv_w(3, 3, cin, cout),
                "gamma": jnp.ones((cout,), F32),
                "beta": jnp.zeros((cout,), F32)}

    def decoder(cin):
        return {"conv1": convbn(cin, cin),
                "conv2": convbn(2 * cin, cin),
                "up_w": rnd((cin, 2, 2, cin // 2), cin * 4),
                "up_b": jnp.zeros((cin // 2,), F32)}

    def chatt(c):
        return {"w1": rnd((c, c), c), "w2": rnd((c, c), c)}

    def spatial(c):
        c2 = 2 * c
        return {"branches": [{"w3": conv_w(3, 3, c2, c2),
                              "gamma": jnp.ones((c2,), F32),
                              "beta": jnp.zeros((c2,), F32),
                              "w1": rnd((c2, c2), c2)} for _ in range(4)]}

    def fusion(c):
        return {"ca1": chatt(c), "ca2": chatt(c), "sp": spatial(c),
                "out": convbn(2 * c, c)}

    def branch():
        return {"begin_w": conv_w(3, 3, n_channels, 32),
                "begin_b": jnp.zeros((32,), F32),
                "enc1a": convbn(32, 64), "enc1b": convbn(64, 64),
                "enc2a": convbn(64, 128), "enc2b": convbn(128, 128),
                "enc3a": convbn(128, 256), "enc3b": convbn(256, 256),
                "enc4a": convbn(256, 512), "enc4b": convbn(512, 512),
                "dec4": decoder(512), "dec3": decoder(256),
                "dec2": decoder(128), "dec1": decoder(64)}

    return {"top": branch(), "bot": branch(),
            "fusion4": fusion(512), "fusion3": fusion(256),
            "fusion2": fusion(128), "fusion1": fusion(64),
            "out_top": {"w": conv_w(2, 1, 32, n_classes),
                        "b": jnp.zeros((n_classes,), F32)}}


# ---------------------------------------------------------------------------
# MSCNet forward
# ---------------------------------------------------------------------------
def mscnet_forward(x_nchw, params, output_size):
    x = jnp.transpose(x_nchw, (0, 2, 3, 1)).astype(F32)   # NCHW -> NHWC

    def encode(xin, bp):
        x0 = conv2d(xin, bp["begin_w"], bias=bp["begin_b"])   # 3x3, no pad
        x1a = first_half_encoder(x0, bp["enc1a"])
        x1b = conv_bn(x1a, bp["enc1b"])
        x2a = first_half_encoder(x1b, bp["enc2a"])
        x2b = conv_bn(x2a, bp["enc2b"])
        x3a = first_half_encoder(x2b, bp["enc3a"])
        x3b = conv_bn(x3a, bp["enc3b"])
        x4a = first_half_encoder(x3b, bp["enc4a"])
        x4b = conv_bn(x4a, bp["enc4b"])
        return x1a, x2a, x3a, x4a, x4b

    t1a, t2a, t3a, t4a, t4b = encode(x, params["top"])
    b1a, b2a, b3a, b4a, b4b = encode(x, params["bot"])

    f4 = fusion_block(t4b, b4b, params["fusion4"])
    x4t = pallas_binop(t4b, f4, "add")
    x4b_ = pallas_binop(b4b, f4, "add")
    x4t = decoder_fwd(x4t, t4a, params["top"]["dec4"])
    x4b_ = decoder_fwd(x4b_, b4a, params["bot"]["dec4"])

    f3 = fusion_block(x4t, x4b_, params["fusion3"])
    x3t = pallas_binop(x4t, f3, "add")
    x3b_ = pallas_binop(x4b_, f3, "add")
    x3t = decoder_fwd(x3t, t3a, params["top"]["dec3"])
    x3b_ = decoder_fwd(x3b_, b3a, params["bot"]["dec3"])

    f2 = fusion_block(x3t, x3b_, params["fusion2"])
    x2t = pallas_binop(x3t, f2, "add")
    x2b_ = pallas_binop(x3b_, f2, "add")
    x2t = decoder_fwd(x2t, t2a, params["top"]["dec2"])
    x2b_ = decoder_fwd(x2b_, b2a, params["bot"]["dec2"])

    f1 = fusion_block(x2t, x2b_, params["fusion1"])
    x1t = pallas_binop(x2t, f1, "add")
    x1b_ = pallas_binop(x2b_, f1, "add")
    x1t = decoder_fwd(x1t, t1a, params["top"]["dec1"])
    x1b_ = decoder_fwd(x1b_, b1a, params["bot"]["dec1"])

    # The reference model applies self.out_top to BOTH branches (its out_bot
    # is unused) and sigmoids again; reproduced faithfully.
    x_top = out_head(x1t, params["out_top"], output_size)
    x_bot = out_head(x1b_, params["out_top"], output_size)

    return (jnp.transpose(x_top, (0, 3, 1, 2)),
            jnp.transpose(x_bot, (0, 3, 1, 2)))


# ---------------------------------------------------------------------------
if __name__ == "__main__":
    # Smallest spatial size that keeps the architecture valid: the deepest
    # fusion level must be >= 13 px for the dilation-7 3x3 conv, which forces
    # input spatial >= 210 given the 4 stride-2 pools + valid 3x3 stem conv.
    N, C_IN, S = 1, 3, 210
    OUTPUT_SIZE = 32   # small stand-in for the default 624

    key = jax.random.PRNGKey(0)
    x = jax.random.normal(key, (N, C_IN, S, S), jnp.float32)   # NCHW like torch

    params = make_params(C_IN, n_classes=1)

    x_top, x_bot = mscnet_forward(x, params, OUTPUT_SIZE)
    jax.block_until_ready(x_top)
    jax.block_until_ready(x_bot)

    assert x_top.shape == (N, 1, OUTPUT_SIZE, OUTPUT_SIZE)
    assert x_bot.shape == (N, 1, OUTPUT_SIZE, OUTPUT_SIZE)
    print("KERNEL_OK")
</pallas_src>

<mosaic_0001>
module attributes {stable_mosaic.version = 11 : i64} {
  func.func @_mm_kernel(%arg0: i32, %arg1: i32, %arg2: i32, %arg3: memref<512x27xbf16, #tpu.memory_space<vmem>>, %arg4: memref<27x32xbf16, #tpu.memory_space<vmem>>, %arg5: memref<1x32xf32, #tpu.memory_space<vmem>>, %arg6: memref<512x32xbf16, #tpu.memory_space<vmem>>, %arg7: memref<512x32xf32, #tpu.memory_space<vmem>>) attributes {dimension_semantics = [#tpu.dimension_semantics<parallel>, #tpu.dimension_semantics<parallel>, #tpu.dimension_semantics<arbitrary>], iteration_bounds = array<i64: 85, 1, 1>, scalar_prefetch = 0 : i64, scratch_operands = 1 : i64, tpu.core_type = #tpu.core_type<tc>, window_params = [{transform_indices = @transform_0, window_bounds = array<i64: 512, 27>}, {transform_indices = @transform_1, window_bounds = array<i64: 27, 32>}, {transform_indices = @transform_2, window_bounds = array<i64: 1, 32>}, {transform_indices = @transform_3, window_bounds = array<i64: 512, 32>}]} {
    %c0_i32 = arith.constant 0 : i32
    %0 = arith.cmpi eq, %arg2, %c0_i32 : i32
    %1 = arith.extui %0 : i1 to i32
    %c0_i32_0 = arith.constant 0 : i32
    %2 = arith.cmpi ne, %1, %c0_i32_0 : i32
    scf.if %2 {
      %cst_10 = arith.constant 0.000000e+00 : f32
      %12 = vector.broadcast %cst_10 : f32 to vector<512x32xf32>
      %c0_11 = arith.constant 0 : index
      %c0_12 = arith.constant 0 : index
      %13 = vector.load %arg7[%c0_11, %c0_12] : memref<512x32xf32, #tpu.memory_space<vmem>>, vector<512x32xf32>
      tpu.vector_store %arg7[%c0_11, %c0_12], %12 {strides = array<i32>} : memref<512x32xf32, #tpu.memory_space<vmem>>, vector<512x32xf32>,
    } else {
    }
    %c0 = arith.constant 0 : index
    %c0_1 = arith.constant 0 : index
    %3 = vector.load %arg7[%c0, %c0_1] : memref<512x32xf32, #tpu.memory_space<vmem>>, vector<512x32xf32>
    %c0_2 = arith.constant 0 : index
    %c0_3 = arith.constant 0 : index
    %4 = vector.load %arg3[%c0_2, %c0_3] : memref<512x27xbf16, #tpu.memory_space<vmem>>, vector<512x27xbf16>
    %c0_4 = arith.constant 0 : index
    %c0_5 = arith.constant 0 : index
    %5 = vector.load %arg4[%c0_4, %c0_5] : memref<27x32xbf16, #tpu.memory_space<vmem>>, vector<27x32xbf16>
    %cst = arith.constant dense<0.000000e+00> : vector<512x32xf32>
    %6 = tpu.matmul %4, %5, %cst {dimension_numbers = #tpu.dot_dimension_numbers<[1], [0], [0], [1], [0, 0, 1, 1], [], []>} : vector<512x27xbf16>, vector<27x32xbf16>, vector<512x32xf32> -> vector<512x32xf32>
    %7 = arith.addf %3, %6 : vector<512x32xf32>
    %c0_6 = arith.constant 0 : index
    %c0_7 = arith.constant 0 : index
    %8 = vector.load %arg7[%c0_6, %c0_7] : memref<512x32xf32, #tpu.memory_space<vmem>>, vector<512x32xf32>
    tpu.vector_store %arg7[%c0_6, %c0_7], %7 {strides = array<i32>} : memref<512x32xf32, #tpu.memory_space<vmem>>, vector<512x32xf32>,
    %c0_i32_8 = arith.constant 0 : i32
    %9 = arith.cmpi eq, %arg2, %c0_i32_8 : i32
    %10 = arith.extui %9 : i1 to i32
    %c0_i32_9 = arith.constant 0 : i32
    %11 = arith.cmpi ne, %10, %c0_i32_9 : i32
    scf.if %11 {
      %c0_10 = arith.constant 0 : index
      %c0_11 = arith.constant 0 : index
      %12 = vector.load %arg7[%c0_10, %c0_11] : memref<512x32xf32, #tpu.memory_space<vmem>>, vector<512x32xf32>
      %c0_12 = arith.constant 0 : index
      %c0_13 = arith.constant 0 : index
      %13 = vector.load %arg5[%c0_12, %c0_13] : memref<1x32xf32, #tpu.memory_space<vmem>>, vector<1x32xf32>
      %14 = vector.broadcast %13 : vector<1x32xf32> to vector<512x32xf32>
      %15 = arith.addf %12, %14 : vector<512x32xf32>
      %16 = arith.truncf %15 : vector<512x32xf32> to vector<512x32xbf16>
      %c0_14 = arith.constant 0 : index
      %c0_15 = arith.constant 0 : index
      %17 = vector.load %arg6[%c0_14, %c0_15] : memref<512x32xbf16, #tpu.memory_space<vmem>>, vector<512x32xbf16>
      tpu.vector_store %arg6[%c0_14, %c0_15], %16 {strides = array<i32>} : memref<512x32xbf16, #tpu.memory_space<vmem>>, vector<512x32xbf16>,
    } else {
    }
    return
  }
  func.func @transform_0(%arg0: i32, %arg1: i32, %arg2: i32) -> (i32, i32) {
    %c0_i32 = arith.constant 0 : i32
    return %arg0, %arg2 : i32, i32
  }
  func.func @transform_1(%arg0: i32, %arg1: i32, %arg2: i32) -> (i32, i32) {
    %c0_i32 = arith.constant 0 : i32
    return %arg2, %arg1 : i32, i32
  }
  func.func @transform_2(%arg0: i32, %arg1: i32, %arg2: i32) -> (i32, i32) {
    %c0_i32 = arith.constant 0 : i32
    %c0_i32_0 = arith.constant 0 : i32
    return %c0_i32, %arg1 : i32, i32
  }
  func.func @transform_3(%arg0: i32, %arg1: i32, %arg2: i32) -> (i32, i32) {
    %c0_i32 = arith.constant 0 : i32
    return %arg0, %arg1 : i32, i32
  }
}

</mosaic_0001>

<llo_original>
// kernel: tpu_custom_call.1
$region0: #{tpu_custom_call.1}
  #allocation0 [shape = 'u32[]', space=smem, size = 0x4, offset = 0x4, fixed_abs, tag = 'smem constant byte address 0x4 - core index']
  #allocation1 [shape = 'u32[144,128]{1,0:T(1,128)}', space=vmem, size = 0x12000, scoped, tag = 'internal scratch']
  #allocation2 [shape = 'f32[512,32]{1,0:T(8,128)}', space=vmem, size = 0x40000, scoped, tag = 'scratch operand']
  %s0 = inlined_call_operand.vmem [shape: bf16[43264,27], index: 0, kind: input, shape index: {}]
  %s1 = inlined_call_operand.vmem [shape: bf16[27,32], index: 1, kind: input, shape index: {}]
  %s2 = inlined_call_operand.vmem [shape: f32[1,32], index: 2, kind: input, shape index: {}]
  %s3 = inlined_call_operand.vmem [shape: bf16[43264,32], index: 3, kind: output, shape index: {}]
  %s4 = sld [smem:[#allocation0]]
  $region97: #{tpu_custom_call.1} parent=0
    _
  %s6 = ssub.s32 1, %s4
  %s7 = scalar_select 0, %s6, %s4
  $region1: #{tpu_custom_call.1} parent=0
    #allocation3 [shape = 'u8[262144]{0}', space=vmem, size = 0x40000, scoped, tag = 'output window, operand 0']
    loop: start=0, step=1, limit=87
    $region2: #{tpu_custom_call.1} parent=1 // loop_pre_header
      _
    $region3: #{tpu_custom_call.1} parent=1 // loop_header
      %s9 = sphi 0, %s13
      %p10 = scmp.ge.s32.totalorder %s9, 87
      %s16 = sphi 0, %s35
      %s17 = sphi 0, %s31
      %s18 = sphi 0, %s27
      %s19 = sphi 0, %s16
      %s20 = sphi 0, %s17
      %s21 = sphi 0, %s18
      %s22 = sphi 0, %s19
      %s23 = sphi 0, %s20
      %s24 = sphi 0, %s21
      %s40 = sphi 0, %s42
      %s43 = sphi 0, %s40
      %s44 = sphi 0, %s43
      %s60 = sphi 0, %s44
      %s68 = sphi 0, %s70
      %s71 = sphi 0, %s68
      %s72 = sphi 0, %s71
      %s88 = sphi 0, %s72
      %s94 = sphi 0, %s96
      %s97 = sphi 0, %s94
      %s98 = sphi 0, %s97
      %s114 = sphi 0, %s98
      %s122 = sphi 0, %s124
      %s125 = sphi 0, %s122
      %s126 = sphi 0, %s125
      %s142 = sphi 0, %s126
    $region4: #{tpu_custom_call.1} parent=1 // loop_header_branch
      %12 = sbr.rel (%p10) target = $region8
    $region5: #{tpu_custom_call.1} parent=1 // loop_body
      %s14 = ssub.s32 %s9, 1
      %s15 = ssub.s32 %s9, 2
      %s25 = sadd.s32 1, %s18
      %p26 = scmp.ge.s32.totalorder %s25, 1
      %s27 = scalar_select %p26, 0, %s25
      %s28 = sadd.s32 1, %s17
      %s29 = scalar_select %p26, %s28, %s17
      %p30 = scmp.ge.s32.totalorder %s29, 1
      %s31 = scalar_select %p30, 0, %s29
      %s32 = sadd.s32 1, %s16
      %s33 = scalar_select %p30, %s32, %s16
      %p34 = scmp.ge.s32.totalorder %s33, 85
      %s35 = scalar_select %p34, 0, %s33
      %s36 = ssub.s32 %s16, %s35
      %s37 = ssub.s32 %s18, %s27
      %s38 = sor.u32 %s36, %s37
      %p39 = scmp.eq.s32.totalorder %s38, 0
      %s41 = sadd.s32 %s40, 1
      %s42 = scalar_select %p39, %s40, %s41
      %p45 = pneg %p39
      %p46 = scmp.eq.s32.totalorder %s9, 84
      %p47 = por %p45, %p46
      %p48 = scmp.ne.s32.totalorder %s40, %s43
      %p49 = scmp.eq.s32.totalorder %s9, 0
      %p50 = por %p48, %p49
      %p51 = scmp.ne.s32.totalorder %s40, %s43
      %p52 = scmp.eq.s32.totalorder %s14, 84
      %p53 = por %p51, %p52
      %p54 = scmp.ne.s32.totalorder %s43, %s44
      %p55 = scmp.eq.s32.totalorder %s14, 0
      %p56 = por %p54, %p55
      %p57 = scmp.ne.s32.totalorder %s43, %s44
      %p58 = scmp.eq.s32.totalorder %s15, 84
      %p59 = por %p57, %p58
      %p61 = scmp.ne.s32.totalorder %s44, %s60
      %p62 = scmp.eq.s32.totalorder %s15, 0
      %p63 = por %p61, %p62
      %s64 = ssub.s32 %s18, %s27
      %s65 = ssub.s32 %s17, %s31
      %s66 = sor.u32 %s64, %s65
      %p67 = scmp.eq.s32.totalorder %s66, 0
      %s69 = sadd.s32 %s68, 1
      %s70 = scalar_select %p67, %s68, %s69
      %p73 = pneg %p67
      %p74 = scmp.eq.s32.totalorder %s9, 84
      %p75 = por %p73, %p74
      %p76 = scmp.ne.s32.totalorder %s68, %s71
      %p77 = scmp.eq.s32.totalorder %s9, 0
      %p78 = por %p76, %p77
      %p79 = scmp.ne.s32.totalorder %s68, %s71
      %p80 = scmp.eq.s32.totalorder %s14, 84
      %p81 = por %p79, %p80
      %p82 = scmp.ne.s32.totalorder %s71, %s72
      %p83 = scmp.eq.s32.totalorder %s14, 0
      %p84 = por %p82, %p83
      %p85 = scmp.ne.s32.totalorder %s71, %s72
      %p86 = scmp.eq.s32.totalorder %s15, 84
      %p87 = por %p85, %p86
      %p89 = scmp.ne.s32.totalorder %s72, %s88
      %p90 = scmp.eq.s32.totalorder %s15, 0
      %p91 = por %p89, %p90
      %s92 = ssub.s32 %s17, %s31
      %p93 = scmp.eq.s32.totalorder %s92, 0
      %s95 = sadd.s32 %s94, 1
      %s96 = scalar_select %p93, %s94, %s95
      %p99 = pneg %p93
      %p100 = scmp.eq.s32.totalorder %s9, 84
      %p101 = por %p99, %p100
      %p102 = scmp.ne.s32.totalorder %s94, %s97
      %p103 = scmp.eq.s32.totalorder %s9, 0
      %p104 = por %p102, %p103
      %p105 = scmp.ne.s32.totalorder %s94, %s97
      %p106 = scmp.eq.s32.totalorder %s14, 84
      %p107 = por %p105, %p106
      %p108 = scmp.ne.s32.totalorder %s97, %s98
      %p109 = scmp.eq.s32.totalorder %s14, 0
      %p110 = por %p108, %p109
      %p111 = scmp.ne.s32.totalorder %s97, %s98
      %p112 = scmp.eq.s32.totalorder %s15, 84
      %p113 = por %p111, %p112
      %p115 = scmp.ne.s32.totalorder %s98, %s114
      %p116 = scmp.eq.s32.totalorder %s15, 0
      %p117 = por %p115, %p116
      %s118 = ssub.s32 %s16, %s35
      %s119 = ssub.s32 %s17, %s31
      %s120 = sor.u32 %s118, %s119
      %p121 = scmp.eq.s32.totalorder %s120, 0
      %s123 = sadd.s32 %s122, 1
      %s124 = scalar_select %p121, %s122, %s123
      %p127 = pneg %p121
      %p128 = scmp.eq.s32.totalorder %s9, 84
      %p129 = por %p127, %p128
      %p130 = scmp.ne.s32.totalorder %s122, %s125
      %p131 = scmp.eq.s32.totalorder %s9, 0
      %p132 = por %p130, %p131
      %p133 = scmp.ne.s32.totalorder %s122, %s125
      %p134 = scmp.eq.s32.totalorder %s14, 84
      %p135 = por %p133, %p134
      %p136 = scmp.ne.s32.totalorder %s125, %s126
      %p137 = scmp.eq.s32.totalorder %s14, 0
      %p138 = por %p136, %p137
      %p139 = scmp.ne.s32.totalorder %s125, %s126
      %p140 = scmp.eq.s32.totalorder %s15, 84
      %p141 = por %p139, %p140
      %p143 = scmp.ne.s32.totalorder %s126, %s142
      %p144 = scmp.eq.s32.totalorder %s15, 0
      %p145 = por %p143, %p144
      %p146 = scmp.le.s32.totalorder 1, %s9
      %p147 = scmp.lt.s32.totalorder %s9, 86
      %p148 = pnand %p146, %p147
      %p149 = pneg %p148
      // Predicated region
      $region9: #{tpu_custom_call.1} parent=5 // pred_check
        _
      $region10: #{tpu_custom_call.1} parent=5 // pred_check_branch
        %151 = sbr.rel (%p148) target = $region12
      $region11: #{tpu_custom_call.1} parent=5 // pred_region
        %s152 = ssub.s32 %s9, 1
        // Predicated region
        $region13: #{tpu_custom_call.1} parent=11 // pred_check
          %p153 = pneg %p84
        $region14: #{tpu_custom_call.1} parent=11 // pred_check_branch
          %155 = sbr.rel (%p153) target = $region16
        $region15: #{tpu_custom_call.1} parent=11 // pred_region
          %s156 = smul.u32 4, %s21
          %p157 = scmp.lt.s32.totalorder %s156, 3
          %s158 = scalar_select %p157, %s156, 3
          %p159 = scmp.lt.s32.totalorder %s20, 0
          %s160 = scalar_select %p159, %s20, 0
          %s161 = sadd.s32 %s160, %s158
          %s162 = smul.addr %s161, 4
          %s163 = scalar_lea.vmem %s1, %s162
          %s164 = smul.u32 4, %s21
        $region16: #{tpu_custom_call.1} parent=11 // pred_fallthru
          _
        // Predicated region
        $region17: #{tpu_custom_call.1} parent=11 // pred_check
          %p165 = pneg %p110
        $region18: #{tpu_custom_call.1} parent=11 // pred_check_branch
          %167 = sbr.rel (%p165) target = $region20
        $region19: #{tpu_custom_call.1} parent=11 // pred_region
          %p168 = scmp.lt.s32.totalorder %s20, 0
          %s169 = scalar_select %p168, %s20, 0
          %s170 = scalar_lea.vmem %s2, %s169
        $region20: #{tpu_custom_call.1} parent=11 // pred_fallthru
          _
      $region12: #{tpu_custom_call.1} parent=5 // pred_fallthru
        _
      %p171 = scmp.lt.s32.totalorder %s9, 85
      // Predicated region
      $region21: #{tpu_custom_call.1} parent=5 // pred_check
        %p172 = pneg %p171
      $region22: #{tpu_custom_call.1} parent=5 // pred_check_branch
        %174 = sbr.rel (%p172) target = $region24
      $region23: #{tpu_custom_call.1} parent=5 // pred_region
        // Predicated region
        $region25: #{tpu_custom_call.1} parent=23 // pred_check
          %p175 = pneg %p50
        $region26: #{tpu_custom_call.1} parent=23 // pred_check_branch
          %177 = sbr.rel (%p175) target = $region28
        $region27: #{tpu_custom_call.1} parent=23 // pred_region
          %s178 = smul.u32 64, %s16
          %s179 = ssub.s32 5408, %s178
          %p180 = scmp.lt.s32.totalorder %s179, 64
          %s181 = scalar_select %p180, %s179, 64
          %s182 = smul.u32 64, %s181
          %p183 = scmp.lt.s32.totalorder %s178, 5407
          %s184 = scalar_select %p183, %s178, 5407
          %p185 = scmp.lt.s32.totalorder %s18, 0
          %s186 = scalar_select %p185, %s18, 0
          %s187 = sadd.s32 %s186, %s184
          %s188 = smul.addr %s187, 4
          %s189 = scalar_lea.vmem %s0, %s188
          %s190 = smul.u32 64, %s16
          %s191 = ssub.s32 5408, %s190
          %p192 = scmp.lt.s32.totalorder %s191, 64
          %s193 = scalar_select %p192, %s191, 64
          %s194 = smul.u32 64, %s193
        $region28: #{tpu_custom_call.1} parent=23 // pred_fallthru
          _
      $region24: #{tpu_custom_call.1} parent=5 // pred_fallthru
        _
      %p195 = scmp.le.s32.totalorder 1, %s9
      %p196 = scmp.lt.s32.totalorder %s9, 86
      %p197 = pnand %p195, %p196
      %p198 = pneg %p197
      // Predicated region
      $region29: #{tpu_custom_call.1} parent=5 // pred_check
        _
      $region30: #{tpu_custom_call.1} parent=5 // pred_check_branch
        %200 = sbr.rel (%p197) target = $region32
      $region31: #{tpu_custom_call.1} parent=5 // pred_region
        %s201 = ssub.s32 %s9, 1
        %s202 = smul.u32 64, %s19
        %s203 = ssub.s32 5408, %s202
        %p204 = scmp.lt.s32.totalorder %s203, 64
        %s205 = scalar_select %p204, %s203, 64
        %s206 = smul.u32 64, %s205
        %p207 = scmp.lt.s32.totalorder %s202, 5407
        %s208 = scalar_select %p207, %s202, 5407
        %p209 = scmp.lt.s32.totalorder %s21, 0
        %s210 = scalar_select %p209, %s21, 0
        %s211 = sadd.s32 %s210, %s208
        %s212 = smul.addr %s211, 4
        %s213 = scalar_lea.vmem %s0, %s212
        %p214 = pneg %p56
        %p215 = pneg %p53
        %s216 = smul.u32 4, %s21
        %p217 = scmp.lt.s32.totalorder %s216, 3
        %s218 = scalar_select %p217, %s216, 3
        %p219 = scmp.lt.s32.totalorder %s20, 0
        %s220 = scalar_select %p219, %s20, 0
        %s221 = sadd.s32 %s220, %s218
        %s222 = smul.addr %s221, 4
        %s223 = scalar_lea.vmem %s1, %s222
        %p224 = pneg %p84
        %p225 = pneg %p81
        %p226 = scmp.lt.s32.totalorder %s20, 0
        %s227 = scalar_select %p226, %s20, 0
        %s228 = scalar_lea.vmem %s2, %s227
        %p229 = pneg %p110
        %p230 = pneg %p107
        %p231 = pneg %p138
        %p232 = pneg %p135
        %s233 = sand.u32 %s125, 1
        %s234 = sand.u32 %s125, 1
        %s235 = smul.addr %s234, 256
        %s236 = scalar_lea.vmem [#allocation3], %s235
        %s237 = smul.u32 64, %s19
        %s238 = ssub.s32 5408, %s237
        %p239 = scmp.lt.s32.totalorder %s238, 64
        %s240 = scalar_select %p239, %s238, 64
        %s241 = smul.u32 64, %s240
        %p242 = scmp.lt.s32.totalorder %s237, 5407
        %s243 = scalar_select %p242, %s237, 5407
        %p244 = scmp.lt.s32.totalorder %s21, 0
        %s245 = scalar_select %p244, %s21, 0
        %s246 = sadd.s32 %s245, %s243
        %s247 = smul.addr %s246, 4
        %s248 = scalar_lea.vmem %s0, %s247
        %s249 = smul.u32 64, %s19
        %s250 = ssub.s32 5408, %s249
        %p251 = scmp.lt.s32.totalorder %s250, 64
        %s252 = scalar_select %p251, %s250, 64
        %s253 = smul.u32 64, %s252
        %s254 = smul.u32 4, %s21
        %p255 = scmp.lt.s32.totalorder %s254, 3
        %s256 = scalar_select %p255, %s254, 3
        %p257 = scmp.lt.s32.totalorder %s20, 0
        %s258 = scalar_select %p257, %s20, 0
        %s259 = sadd.s32 %s258, %s256
        %s260 = smul.addr %s259, 4
        %s261 = scalar_lea.vmem %s1, %s260
        %s262 = smul.u32 4, %s21
        %p263 = scmp.lt.s32.totalorder %s20, 0
        %s264 = scalar_select %p263, %s20, 0
        %s265 = scalar_lea.vmem %s2, %s264
        %s266 = smul.u32 64, %s19
        %s267 = ssub.s32 5408, %s266
        %p268 = scmp.lt.s32.totalorder %s267, 64
        %s269 = scalar_select %p268, %s267, 64
        %s270 = smul.u32 64, %s269
        %p272 = scmp.eq.s32.totalorder %s21, 0
        // Predicated region
        $region33: #{tpu_custom_call.1} parent=31 // pred_check
          %p273 = pneg %p272
        $region34: #{tpu_custom_call.1} parent=31 // pred_check_branch
          %275 = sbr.rel (%p273) target = $region36
        $region35: #{tpu_custom_call.1} parent=31 // pred_region
          %vm276 = vcmask 261120
          %277 = vst.msk [vmem:[#allocation2] sm:$0xff] %vm276, 0.0
          %278 = vst.msk [vmem:[#allocation2 + $0x8] sm:$0xff] %vm276, 0.0
          %279 = vst.msk [vmem:[#allocation2 + $0x10] sm:$0xff] %vm276, 0.0
          %280 = vst.msk [vmem:[#allocation2 + $0x18] sm:$0xff] %vm276, 0.0
          %281 = vst.msk [vmem:[#allocation2 + $0x20] sm:$0xff] %vm276, 0.0
          %282 = vst.msk [vmem:[#allocation2 + $0x28] sm:$0xff] %vm276, 0.0
          %283 = vst.msk [vmem:[#allocation2 + $0x30] sm:$0xff] %vm276, 0.0
          %284 = vst.msk [vmem:[#allocation2 + $0x38] sm:$0xff] %vm276, 0.0
          %285 = vst.msk [vmem:[#allocation2 + $0x40] sm:$0xff] %vm276, 0.0
          %286 = vst.msk [vmem:[#allocation2 + $0x48] sm:$0xff] %vm276, 0.0
          %287 = vst.msk [vmem:[#allocation2 + $0x50] sm:$0xff] %vm276, 0.0
          %288 = vst.msk [vmem:[#allocation2 + $0x58] sm:$0xff] %vm276, 0.0
          %289 = vst.msk [vmem:[#allocation2 + $0x60] sm:$0xff] %vm276, 0.0
          %290 = vst.msk [vmem:[#allocation2 + $0x68] sm:$0xff] %vm276, 0.0
          %291 = vst.msk [vmem:[#allocation2 + $0x70] sm:$0xff] %vm276, 0.0
          %292 = vst.msk [vmem:[#allocation2 + $0x78] sm:$0xff] %vm276, 0.0
          %293 = vst.msk [vmem:[#allocation2 + $0x80] sm:$0xff] %vm276, 0.0
          %294 = vst.msk [vmem:[#allocation2 + $0x88] sm:$0xff] %vm276, 0.0
          %295 = vst.msk [vmem:[#allocation2 + $0x90] sm:$0xff] %vm276, 0.0
          %296 = vst.msk [vmem:[#allocation2 + $0x98] sm:$0xff] %vm276, 0.0
          %297 = vst.msk [vmem:[#allocation2 + $0xa0] sm:$0xff] %vm276, 0.0
          %298 = vst.msk [vmem:[#allocation2 + $0xa8] sm:$0xff] %vm276, 0.0
          %299 = vst.msk [vmem:[#allocation2 + $0xb0] sm:$0xff] %vm276, 0.0
          %300 = vst.msk [vmem:[#allocation2 + $0xb8] sm:$0xff] %vm276, 0.0
          %301 = vst.msk [vmem:[#allocation2 + $0xc0] sm:$0xff] %vm276, 0.0
          %302 = vst.msk [vmem:[#allocation2 + $0xc8] sm:$0xff] %vm276, 0.0
          %303 = vst.msk [vmem:[#allocation2 + $0xd0] sm:$0xff] %vm276, 0.0
          %304 = vst.msk [vmem:[#allocation2 + $0xd8] sm:$0xff] %vm276, 0.0
          %305 = vst.msk [vmem:[#allocation2 + $0xe0] sm:$0xff] %vm276, 0.0
          %306 = vst.msk [vmem:[#allocation2 + $0xe8] sm:$0xff] %vm276, 0.0
          %307 = vst.msk [vmem:[#allocation2 + $0xf0] sm:$0xff] %vm276, 0.0
          %308 = vst.msk [vmem:[#allocation2 + $0xf8] sm:$0xff] %vm276, 0.0
          %309 = vst.msk [vmem:[#allocation2 + $0x100] sm:$0xff] %vm276, 0.0
          %310 = vst.msk [vmem:[#allocation2 + $0x108] sm:$0xff] %vm276, 0.0
          %311 = vst.msk [vmem:[#allocation2 + $0x110] sm:$0xff] %vm276, 0.0
          %312 = vst.msk [vmem:[#allocation2 + $0x118] sm:$0xff] %vm276, 0.0
          %313 = vst.msk [vmem:[#allocation2 + $0x120] sm:$0xff] %vm276, 0.0
          %314 = vst.msk [vmem:[#allocation2 + $0x128] sm:$0xff] %vm276, 0.0
          %315 = vst.msk [vmem:[#allocation2 + $0x130] sm:$0xff] %vm276, 0.0
          %316 = vst.msk [vmem:[#allocation2 + $0x138] sm:$0xff] %vm276, 0.0
          %317 = vst.msk [vmem:[#allocation2 + $0x140] sm:$0xff] %vm276, 0.0
          %318 = vst.msk [vmem:[#allocation2 + $0x148] sm:$0xff] %vm276, 0.0
          %319 = vst.msk [vmem:[#allocation2 + $0x150] sm:$0xff] %vm276, 0.0
          %320 = vst.msk [vmem:[#allocation2 + $0x158] sm:$0xff] %vm276, 0.0
          %321 = vst.msk [vmem:[#allocation2 + $0x160] sm:$0xff] %vm276, 0.0
          %322 = vst.msk [vmem:[#allocation2 + $0x168] sm:$0xff] %vm276, 0.0
          %323 = vst.msk [vmem:[#allocation2 + $0x170] sm:$0xff] %vm276, 0.0
          %324 = vst.msk [vmem:[#allocation2 + $0x178] sm:$0xff] %vm276, 0.0
          %325 = vst.msk [vmem:[#allocation2 + $0x180] sm:$0xff] %vm276, 0.0
          %326 = vst.msk [vmem:[#allocation2 + $0x188] sm:$0xff] %vm276, 0.0
          %327 = vst.msk [vmem:[#allocation2 + $0x190] sm:$0xff] %vm276, 0.0
          %328 = vst.msk [vmem:[#allocation2 + $0x198] sm:$0xff] %vm276, 0.0
          %329 = vst.msk [vmem:[#allocation2 + $0x1a0] sm:$0xff] %vm276, 0.0
          %330 = vst.msk [vmem:[#allocation2 + $0x1a8] sm:$0xff] %vm276, 0.0
          %331 = vst.msk [vmem:[#allocation2 + $0x1b0] sm:$0xff] %vm276, 0.0
          %332 = vst.msk [vmem:[#allocation2 + $0x1b8] sm:$0xff] %vm276, 0.0
          %333 = vst.msk [vmem:[#allocation2 + $0x1c0] sm:$0xff] %vm276, 0.0
          %334 = vst.msk [vmem:[#allocation2 + $0x1c8] sm:$0xff] %vm276, 0.0
          %335 = vst.msk [vmem:[#allocation2 + $0x1d0] sm:$0xff] %vm276, 0.0
          %336 = vst.msk [vmem:[#allocation2 + $0x1d8] sm:$0xff] %vm276, 0.0
          %337 = vst.msk [vmem:[#allocation2 + $0x1e0] sm:$0xff] %vm276, 0.0
          %338 = vst.msk [vmem:[#allocation2 + $0x1e8] sm:$0xff] %vm276, 0.0
          %339 = vst.msk [vmem:[#allocation2 + $0x1f0] sm:$0xff] %vm276, 0.0
          %340 = vst.msk [vmem:[#allocation2 + $0x1f8] sm:$0xff] %vm276, 0.0
        $region36: #{tpu_custom_call.1} parent=31 // pred_fallthru
          _
        %v341 = vld [vmem:[#allocation2] sm:$0xff]
        %v342 = vld [vmem:[#allocation2 + $0x8] sm:$0xff]
        %v343 = vld [vmem:[#allocation2 + $0x10] sm:$0xff]
        %v344 = vld [vmem:[#allocation2 + $0x18] sm:$0xff]
        %v345 = vld [vmem:[#allocation2 + $0x20] sm:$0xff]
        %v346 = vld [vmem:[#allocation2 + $0x28] sm:$0xff]
        %v347 = vld [vmem:[#allocation2 + $0x30] sm:$0xff]
        %v348 = vld [vmem:[#allocation2 + $0x38] sm:$0xff]
        %v349 = vld [vmem:[#allocation2 + $0x40] sm:$0xff]
        %v350 = vld [vmem:[#allocation2 + $0x48] sm:$0xff]
        %v351 = vld [vmem:[#allocation2 + $0x50] sm:$0xff]
        %v352 = vld [vmem:[#allocation2 + $0x58] sm:$0xff]
        %v353 = vld [vmem:[#allocation2 + $0x60] sm:$0xff]
        %v354 = vld [vmem:[#allocation2 + $0x68] sm:$0xff]
        %v355 = vld [vmem:[#allocation2 + $0x70] sm:$0xff]
        %v356 = vld [vmem:[#allocation2 + $0x78] sm:$0xff]
        %v357 = vld [vmem:[#allocation2 + $0x80] sm:$0xff]
        %v358 = vld [vmem:[#allocation2 + $0x88] sm:$0xff]
        %v359 = vld [vmem:[#allocation2 + $0x90] sm:$0xff]
        %v360 = vld [vmem:[#allocation2 + $0x98] sm:$0xff]
        %v361 = vld [vmem:[#allocation2 + $0xa0] sm:$0xff]
        %v362 = vld [vmem:[#allocation2 + $0xa8] sm:$0xff]
        %v363 = vld [vmem:[#allocation2 + $0xb0] sm:$0xff]
        %v364 = vld [vmem:[#allocation2 + $0xb8] sm:$0xff]
        %v365 = vld [vmem:[#allocation2 + $0xc0] sm:$0xff]
        %v366 = vld [vmem:[#allocation2 + $0xc8] sm:$0xff]
        %v367 = vld [vmem:[#allocation2 + $0xd0] sm:$0xff]
        %v368 = vld [vmem:[#allocation2 + $0xd8] sm:$0xff]
        %v369 = vld [vmem:[#allocation2 + $0xe0] sm:$0xff]
        %v370 = vld [vmem:[#allocation2 + $0xe8] sm:$0xff]
        %v371 = vld [vmem:[#allocation2 + $0xf0] sm:$0xff]
        %v372 = vld [vmem:[#allocation2 + $0xf8] sm:$0xff]
        %v373 = vld [vmem:[#allocation2 + $0x100] sm:$0xff]
        %v374 = vld [vmem:[#allocation2 + $0x108] sm:$0xff]
        %v375 = vld [vmem:[#allocation2 + $0x110] sm:$0xff]
        %v376 = vld [vmem:[#allocation2 + $0x118] sm:$0xff]
        %v377 = vld [vmem:[#allocation2 + $0x120] sm:$0xff]
        %v378 = vld [vmem:[#allocation2 + $0x128] sm:$0xff]
        %v379 = vld [vmem:[#allocation2 + $0x130] sm:$0xff]
        %v380 = vld [vmem:[#allocation2 + $0x138] sm:$0xff]
        %v381 = vld [vmem:[#allocation2 + $0x140] sm:$0xff]
        %v382 = vld [vmem:[#allocation2 + $0x148] sm:$0xff]
        %v383 = vld [vmem:[#allocation2 + $0x150] sm:$0xff]
        %v384 = vld [vmem:[#allocation2 + $0x158] sm:$0xff]
        %v385 = vld [vmem:[#allocation2 + $0x160] sm:$0xff]
        %v386 = vld [vmem:[#allocation2 + $0x168] sm:$0xff]
        %v387 = vld [vmem:[#allocation2 + $0x170] sm:$0xff]
        %v388 = vld [vmem:[#allocation2 + $0x178] sm:$0xff]
        %v389 = vld [vmem:[#allocation2 + $0x180] sm:$0xff]
        %v390 = vld [vmem:[#allocation2 + $0x188] sm:$0xff]
        %v391 = vld [vmem:[#allocation2 + $0x190] sm:$0xff]
        %v392 = vld [vmem:[#allocation2 + $0x198] sm:$0xff]
        %v393 = vld [vmem:[#allocation2 + $0x1a0] sm:$0xff]
        %v394 = vld [vmem:[#allocation2 + $0x1a8] sm:$0xff]
        %v395 = vld [vmem:[#allocation2 + $0x1b0] sm:$0xff]
        %v396 = vld [vmem:[#allocation2 + $0x1b8] sm:$0xff]
        %v397 = vld [vmem:[#allocation2 + $0x1c0] sm:$0xff]
        %v398 = vld [vmem:[#allocation2 + $0x1c8] sm:$0xff]
        %v399 = vld [vmem:[#allocation2 + $0x1d0] sm:$0xff]
        %v400 = vld [vmem:[#allocation2 + $0x1d8] sm:$0xff]
        %v401 = vld [vmem:[#allocation2 + $0x1e0] sm:$0xff]
        %v402 = vld [vmem:[#allocation2 + $0x1e8] sm:$0xff]
        %v403 = vld [vmem:[#allocation2 + $0x1f0] sm:$0xff]
        %v404 = vld [vmem:[#allocation2 + $0x1f8] sm:$0xff]
        %v405 = vld [vmem:[%s248] sm:$0xf]
        %v406 = vld [vmem:[%s248 + $0x4] sm:$0xf]
        %v407 = vld [vmem:[%s248 + $0x8] sm:$0xf]
        %v408 = vld [vmem:[%s248 + $0xc] sm:$0xf]
        %v409 = vld [vmem:[%s248 + $0x10] sm:$0xf]
        %v410 = vld [vmem:[%s248 + $0x14] sm:$0xf]
        %v411 = vld [vmem:[%s248 + $0x18] sm:$0xf]
        %v412 = vld [vmem:[%s248 + $0x1c] sm:$0xf]
        %v413 = vld [vmem:[%s248 + $0x20] sm:$0xf]
        %v414 = vld [vmem:[%s248 + $0x24] sm:$0xf]
        %v415 = vld [vmem:[%s248 + $0x28] sm:$0xf]
        %v416 = vld [vmem:[%s248 + $0x2c] sm:$0xf]
        %v417 = vld [vmem:[%s248 + $0x30] sm:$0xf]
        %v418 = vld [vmem:[%s248 + $0x34] sm:$0xf]
        %v419 = vld [vmem:[%s248 + $0x38] sm:$0xf]
        %v420 = vld [vmem:[%s248 + $0x3c] sm:$0xf]
        %v421 = vld [vmem:[%s248 + $0x40] sm:$0xf]
        %v422 = vld [vmem:[%s248 + $0x44] sm:$0xf]
        %v423 = vld [vmem:[%s248 + $0x48] sm:$0xf]
        %v424 = vld [vmem:[%s248 + $0x4c] sm:$0xf]
        %v425 = vld [vmem:[%s248 + $0x50] sm:$0xf]
        %v426 = vld [vmem:[%s248 + $0x54] sm:$0xf]
        %v427 = vld [vmem:[%s248 + $0x58] sm:$0xf]
        %v428 = vld [vmem:[%s248 + $0x5c] sm:$0xf]
        %v429 = vld [vmem:[%s248 + $0x60] sm:$0xf]
        %v430 = vld [vmem:[%s248 + $0x64] sm:$0xf]
        %v431 = vld [vmem:[%s248 + $0x68] sm:$0xf]
        %v432 = vld [vmem:[%s248 + $0x6c] sm:$0xf]
        %v433 = vld [vmem:[%s248 + $0x70] sm:$0xf]
        %v434 = vld [vmem:[%s248 + $0x74] sm:$0xf]
        %v435 = vld [vmem:[%s248 + $0x78] sm:$0xf]
        %v436 = vld [vmem:[%s248 + $0x7c] sm:$0xf]
        %v437 = vld [vmem:[%s248 + $0x80] sm:$0xf]
        %v438 = vld [vmem:[%s248 + $0x84] sm:$0xf]
        %v439 = vld [vmem:[%s248 + $0x88] sm:$0xf]
        %v440 = vld [vmem:[%s248 + $0x8c] sm:$0xf]
        %v441 = vld [vmem:[%s248 + $0x90] sm:$0xf]
        %v442 = vld [vmem:[%s248 + $0x94] sm:$0xf]
        %v443 = vld [vmem:[%s248 + $0x98] sm:$0xf]
        %v444 = vld [vmem:[%s248 + $0x9c] sm:$0xf]
        %v445 = vld [vmem:[%s248 + $0xa0] sm:$0xf]
        %v446 = vld [vmem:[%s248 + $0xa4] sm:$0xf]
        %v447 = vld [vmem:[%s248 + $0xa8] sm:$0xf]
        %v448 = vld [vmem:[%s248 + $0xac] sm:$0xf]
        %v449 = vld [vmem:[%s248 + $0xb0] sm:$0xf]
        %v450 = vld [vmem:[%s248 + $0xb4] sm:$0xf]
        %v451 = vld [vmem:[%s248 + $0xb8] sm:$0xf]
        %v452 = vld [vmem:[%s248 + $0xbc] sm:$0xf]
        %v453 = vld [vmem:[%s248 + $0xc0] sm:$0xf]
        %v454 = vld [vmem:[%s248 + $0xc4] sm:$0xf]
        %v455 = vld [vmem:[%s248 + $0xc8] sm:$0xf]
        %v456 = vld [vmem:[%s248 + $0xcc] sm:$0xf]
        %v457 = vld [vmem:[%s248 + $0xd0] sm:$0xf]
        %v458 = vld [vmem:[%s248 + $0xd4] sm:$0xf]
        %v459 = vld [vmem:[%s248 + $0xd8] sm:$0xf]
        %v460 = vld [vmem:[%s248 + $0xdc] sm:$0xf]
        %v461 = vld [vmem:[%s248 + $0xe0] sm:$0xf]
        %v462 = vld [vmem:[%s248 + $0xe4] sm:$0xf]
        %v463 = vld [vmem:[%s248 + $0xe8] sm:$0xf]
        %v464 = vld [vmem:[%s248 + $0xec] sm:$0xf]
        %v465 = vld [vmem:[%s248 + $0xf0] sm:$0xf]
        %v466 = vld [vmem:[%s248 + $0xf4] sm:$0xf]
        %v467 = vld [vmem:[%s248 + $0xf8] sm:$0xf]
        %v468 = vld [vmem:[%s248 + $0xfc] sm:$0xf]
        %v469 = vld [vmem:[%s261] sm:$0xf]
        %v470 = vld [vmem:[%s261 + $0x4] sm:$0xf]
        %v471 = vld [vmem:[%s261 + $0x8] sm:$0xf]
        %v472 = vld [vmem:[%s261 + $0xc] sm:$0x3]
        %v537 = vunpack.c.l.b16 %v405
        %v538 = vunpack.c.l.b16 %v406
        %v539 = vunpack.c.l.b16 %v407
        %v540 = vunpack.c.l.b16 %v408
        %v541 = vunpack.c.l.b16 %v409
        %v542 = vunpack.c.l.b16 %v410
        %v543 = vunpack.c.l.b16 %v411
        %v544 = vunpack.c.l.b16 %v412
        %v545 = vunpack.c.l.b16 %v413
        %v546 = vunpack.c.l.b16 %v414
        %v547 = vunpack.c.l.b16 %v415
        %v548 = vunpack.c.l.b16 %v416
        %v549 = vunpack.c.l.b16 %v417
        %v550 = vunpack.c.l.b16 %v418
        %v551 = vunpack.c.l.b16 %v419
        %v552 = vunpack.c.l.b16 %v420
        %v553 = vunpack.c.l.b16 %v421
        %v554 = vunpack.c.l.b16 %v422
        %v555 = vunpack.c.l.b16 %v423
        %v556 = vunpack.c.l.b16 %v424
        %v557 = vunpack.c.l.b16 %v425
        %v558 = vunpack.c.l.b16 %v426
        %v559 = vunpack.c.l.b16 %v427
        %v560 = vunpack.c.l.b16 %v428
        %v561 = vunpack.c.l.b16 %v429
        %v562 = vunpack.c.l.b16 %v430
        %v563 = vunpack.c.l.b16 %v431
        %v564 = vunpack.c.l.b16 %v432
        %v565 = vunpack.c.l.b16 %v433
        %v566 = vunpack.c.l.b16 %v434
        %v567 = vunpack.c.l.b16 %v435
        %v568 = vunpack.c.l.b16 %v436
        %v569 = vunpack.c.l.b16 %v437
        %v570 = vunpack.c.l.b16 %v438
        %v571 = vunpack.c.l.b16 %v439
        %v572 = vunpack.c.l.b16 %v440
        %v573 = vunpack.c.l.b16 %v441
        %v574 = vunpack.c.l.b16 %v442
        %v575 = vunpack.c.l.b16 %v443
        %v576 = vunpack.c.l.b16 %v444
        %v577 = vunpack.c.l.b16 %v445
        %v578 = vunpack.c.l.b16 %v446
        %v579 = vunpack.c.l.b16 %v447
        %v580 = vunpack.c.l.b16 %v448
        %v581 = vunpack.c.l.b16 %v449
        %v582 = vunpack.c.l.b16 %v450
        %v583 = vunpack.c.l.b16 %v451
        %v584 = vunpack.c.l.b16 %v452
        %v585 = vunpack.c.l.b16 %v453
        %v586 = vunpack.c.l.b16 %v454
        %v587 = vunpack.c.l.b16 %v455
        %v588 = vunpack.c.l.b16 %v456
        %v589 = vunpack.c.l.b16 %v457
        %v590 = vunpack.c.l.b16 %v458
        %v591 = vunpack.c.l.b16 %v459
        %v592 = vunpack.c.l.b16 %v460
        %v593 = vunpack.c.l.b16 %v461
        %v594 = vunpack.c.l.b16 %v462
        %v595 = vunpack.c.l.b16 %v463
        %v596 = vunpack.c.l.b16 %v464
        %v597 = vunpack.c.l.b16 %v465
        %v598 = vunpack.c.l.b16 %v466
        %v599 = vunpack.c.l.b16 %v467
        %v600 = vunpack.c.l.b16 %v468
        %v601 = vpack.c.b16 %v538, %v537
        %v602 = vpack.c.b16 %v540, %v539
        %v603 = vpack.c.b16 %v542, %v541
        %v604 = vpack.c.b16 %v544, %v543
        %v605 = vpack.c.b16 %v546, %v545
        %v606 = vpack.c.b16 %v548, %v547
        %v607 = vpack.c.b16 %v550, %v549
        %v608 = vpack.c.b16 %v552, %v551
        %v609 = vpack.c.b16 %v554, %v553
        %v610 = vpack.c.b16 %v556, %v555
        %v611 = vpack.c.b16 %v558, %v557
        %v612 = vpack.c.b16 %v560, %v559
        %v613 = vpack.c.b16 %v562, %v561
        %v614 = vpack.c.b16 %v564, %v563
        %v615 = vpack.c.b16 %v566, %v565
        %v616 = vpack.c.b16 %v568, %v567
        %v617 = vpack.c.b16 %v570, %v569
        %v618 = vpack.c.b16 %v572, %v571
        %v619 = vpack.c.b16 %v574, %v573
        %v620 = vpack.c.b16 %v576, %v575
        %v621 = vpack.c.b16 %v578, %v577
        %v622 = vpack.c.b16 %v580, %v579
        %v623 = vpack.c.b16 %v582, %v581
        %v624 = vpack.c.b16 %v584, %v583
        %v625 = vpack.c.b16 %v586, %v585
        %v626 = vpack.c.b16 %v588, %v587
        %v627 = vpack.c.b16 %v590, %v589
        %v628 = vpack.c.b16 %v592, %v591
        %v629 = vpack.c.b16 %v594, %v593
        %v630 = vpack.c.b16 %v596, %v595
        %v631 = vpack.c.b16 %v598, %v597
        %v632 = vpack.c.b16 %v600, %v599
        %v637 = vunpack.c.l.b16 %v469
        %v638 = vunpack.c.l.b16 %v470
        %v639 = vunpack.c.l.b16 %v471
        %v640 = vunpack.c.l.b16 %v472
        %v641 = vpack.c.b16 %v638, %v637
        %v642 = vpack.c.b16 %v640, %v639
        %vm644 = vcmask 220160
        %v646 = vsel %vm644, %v601, 0
        %v649 = vsel %vm644, %v602, 0
        %v652 = vsel %vm644, %v603, 0
        %v655 = vsel %vm644, %v604, 0
        %v658 = vsel %vm644, %v605, 0
        %v661 = vsel %vm644, %v606, 0
        %v664 = vsel %vm644, %v607, 0
        %v667 = vsel %vm644, %v608, 0
        %v670 = vsel %vm644, %v609, 0
        %v673 = vsel %vm644, %v610, 0
        %v676 = vsel %vm644, %v611, 0
        %v679 = vsel %vm644, %v612, 0
        %v682 = vsel %vm644, %v613, 0
        %v685 = vsel %vm644, %v614, 0
        %v688 = vsel %vm644, %v615, 0
        %v691 = vsel %vm644, %v616, 0
        %v694 = vsel %vm644, %v617, 0
        %v697 = vsel %vm644, %v618, 0
        %v700 = vsel %vm644, %v619, 0
        %v703 = vsel %vm644, %v620, 0
        %v706 = vsel %vm644, %v621, 0
        %v709 = vsel %vm644, %v622, 0
        %v712 = vsel %vm644, %v623, 0
        %v715 = vsel %vm644, %v624, 0
        %v718 = vsel %vm644, %v625, 0
        %v721 = vsel %vm644, %v626, 0
        %v724 = vsel %vm644, %v627, 0
        %v727 = vsel %vm644, %v628, 0
        %v730 = vsel %vm644, %v629, 0
        %v733 = vsel %vm644, %v630, 0
        %v736 = vsel %vm644, %v631, 0
        %v739 = vsel %vm644, %v632, 0
        %vm741 = vcmask 1044480
        %vm742 = vcmask 1045504
        %v743 = vsel %vm741, 4294967295, 65535
        %v744 = vsel %vm742, %v743, 0
        %v746 = vand.u32 %v642, %v744
        %748 = vmatprep.subr.bf16.mxu0 0
        %749 = vmatpush1.bf16.msra.mxu0 %v641
        %750 = vmatprep.subr.bf16.mxu0 0
        %751 = vmatpush1.bf16.msra.mxu0 %v746
        %752 = vmatprep.subr.bf16.mxu0 0
        %753 = vmatpush1.bf16.msra.mxu0 0
        %754 = vmatprep.subr.bf16.mxu0 0
        %755 = vmatpush1.bf16.msra.mxu0 0
        %756 = vmatprep.subr.bf16.mxu0 0
        %757 = vmatpush1.bf16.msra.mxu0 0
        %758 = vmatprep.subr.bf16.mxu0 0
        %759 = vmatpush1.bf16.msra.mxu0 0
        %760 = vmatprep.subr.bf16.mxu0 0
        %761 = vmatpush1.bf16.msra.mxu0 0
        %762 = vmatprep.subr.bf16.mxu0 0
        %763 = vmatpush1.bf16.msra.mxu0 0
        %764 = vmatprep.subr.bf16.mxu0 0
        %765 = vmatpush1.bf16.msra.mxu0 0
        %766 = vmatprep.subr.bf16.mxu0 0
        %767 = vmatpush1.bf16.msra.mxu0 0
        %768 = vmatprep.subr.bf16.mxu0 0
        %769 = vmatpush1.bf16.msra.mxu0 0
        %770 = vmatprep.subr.bf16.mxu0 0
        %771 = vmatpush1.bf16.msra.mxu0 0
        %772 = vmatprep.subr.bf16.mxu0 0
        %773 = vmatpush1.bf16.msra.mxu0 0
        %774 = vmatprep.subr.bf16.mxu0 0
        %775 = vmatpush1.bf16.msra.mxu0 0
        %776 = vmatprep.subr.bf16.mxu0 0
        %777 = vmatpush1.bf16.msra.mxu0 0
        %778 = vmatprep.subr.bf16.mxu0 0
        %779 = vmatpush1.bf16.msra.mxu0 0
        %780 = vmatprep.mubr.bf16.mxu0 0
        %781 = vmatmul.mubr.bf16.gmra.mrb[0].mxu0 %v646
        %v782 = vpop.f32.mrb[0].mxu0
        %v783 = vadd.f32 0.0, %v782
        %v784 = vpop.f32.mrb[0].mxu0
        %v785 = vpop.f32.mrb[0].mxu0
        %v786 = vadd.f32 0.0, %v785
        %v787 = vpop.f32.mrb[0].mxu0
        %788 = vmatprep.mubr.bf16.mxu0 0
        %789 = vmatmul.mubr.bf16.gmra.mrb[0].mxu0 %v649
        %v790 = vpop.f32.mrb[0].mxu0
        %v791 = vadd.f32 0.0, %v790
        %v792 = vpop.f32.mrb[0].mxu0
        %v793 = vpop.f32.mrb[0].mxu0
        %v794 = vadd.f32 0.0, %v793
        %v795 = vpop.f32.mrb[0].mxu0
        %796 = vmatprep.mubr.bf16.mxu0 0
        %797 = vmatmul.mubr.bf16.gmra.mrb[0].mxu0 %v652
        %v798 = vpop.f32.mrb[0].mxu0
        %v799 = vadd.f32 0.0, %v798
        %v800 = vpop.f32.mrb[0].mxu0
        %v801 = vpop.f32.mrb[0].mxu0
        %v802 = vadd.f32 0.0, %v801
        %v803 = vpop.f32.mrb[0].mxu0
        %804 = vmatprep.mubr.bf16.mxu0 0
        %805 = vmatmul.mubr.bf16.gmra.mrb[0].mxu0 %v655
        %v806 = vpop.f32.mrb[0].mxu0
        %v807 = vadd.f32 0.0, %v806
        %v808 = vpop.f32.mrb[0].mxu0
        %v809 = vpop.f32.mrb[0].mxu0
        %v810 = vadd.f32 0.0, %v809
        %v811 = vpop.f32.mrb[0].mxu0
        %812 = vmatprep.mubr.bf16.mxu0 0
        %813 = vmatmul.mubr.bf16.gmra.mrb[0].mxu0 %v658
        %v814 = vpop.f32.mrb[0].mxu0
        %v815 = vadd.f32 0.0, %v814
        %v816 = vpop.f32.mrb[0].mxu0
        %v817 = vpop.f32.mrb[0].mxu0
        %v818 = vadd.f32 0.0, %v817
        %v819 = vpop.f32.mrb[0].mxu0
        %820 = vmatprep.mubr.bf16.mxu0 0
        %821 = vmatmul.mubr.bf16.gmra.mrb[0].mxu0 %v661
        %v822 = vpop.f32.mrb[0].mxu0
        %v823 = vadd.f32 0.0, %v822
        %v824 = vpop.f32.mrb[0].mxu0
        %v825 = vpop.f32.mrb[0].mxu0
        %v826 = vadd.f32 0.0, %v825
        %v827 = vpop.f32.mrb[0].mxu0
        %828 = vmatprep.mubr.bf16.mxu0 0
        %829 = vmatmul.mubr.bf16.gmra.mrb[0].mxu0 %v664
        %v830 = vpop.f32.mrb[0].mxu0
        %v831 = vadd.f32 0.0, %v830
        %v832 = vpop.f32.mrb[0].mxu0
        %v833 = vpop.f32.mrb[0].mxu0
        %v834 = vadd.f32 0.0, %v833
        %v835 = vpop.f32.mrb[0].mxu0
        %836 = vmatprep.mubr.bf16.mxu0 0
        %837 = vmatmul.mubr.bf16.gmra.mrb[0].mxu0 %v667
        %v838 = vpop.f32.mrb[0].mxu0
        %v839 = vadd.f32 0.0, %v838
        %v840 = vpop.f32.mrb[0].mxu0
        %v841 = vpop.f32.mrb[0].mxu0
        %v842 = vadd.f32 0.0, %v841
        %v843 = vpop.f32.mrb[0].mxu0
        %844 = vmatprep.mubr.bf16.mxu0 0
        %845 = vmatmul.mubr.bf16.gmra.mrb[0].mxu0 %v670
        %v846 = vpop.f32.mrb[0].mxu0
        %v847 = vadd.f32 0.0, %v846
        %v848 = vpop.f32.mrb[0].mxu0
        %v849 = vpop.f32.mrb[0].mxu0
        %v850 = vadd.f32 0.0, %v849
        %v851 = vpop.f32.mrb[0].mxu0
        %852 = vmatprep.mubr.bf16.mxu0 0
        %853 = vmatmul.mubr.bf16.gmra.mrb[0].mxu0 %v673
        %v854 = vpop.f32.mrb[0].mxu0
        %v855 = vadd.f32 0.0, %v854
        %v856 = vpop.f32.mrb[0].mxu0
        %v857 = vpop.f32.mrb[0].mxu0
        %v858 = vadd.f32 0.0, %v857
        %v859 = vpop.f32.mrb[0].mxu0
        %860 = vmatprep.mubr.bf16.mxu0 0
        %861 = vmatmul.mubr.bf16.gmra.mrb[0].mxu0 %v676
        %v862 = vpop.f32.mrb[0].mxu0
        %v863 = vadd.f32 0.0, %v862
        %v864 = vpop.f32.mrb[0].mxu0
        %v865 = vpop.f32.mrb[0].mxu0
        %v866 = vadd.f32 0.0, %v865
        %v867 = vpop.f32.mrb[0].mxu0
        %868 = vmatprep.mubr.bf16.mxu0 0
        %869 = vmatmul.mubr.bf16.gmra.mrb[0].mxu0 %v679
        %v870 = vpop.f32.mrb[0].mxu0
        %v871 = vadd.f32 0.0, %v870
        %v872 = vpop.f32.mrb[0].mxu0
        %v873 = vpop.f32.mrb[0].mxu0
        %v874 = vadd.f32 0.0, %v873
        %v875 = vpop.f32.mrb[0].mxu0
        %876 = vmatprep.mubr.bf16.mxu0 0
        %877 = vmatmul.mubr.bf16.gmra.mrb[0].mxu0 %v682
        %v878 = vpop.f32.mrb[0].mxu0
        %v879 = vadd.f32 0.0, %v878
        %v880 = vpop.f32.mrb[0].mxu0
        %v881 = vpop.f32.mrb[0].mxu0
        %v882 = vadd.f32 0.0, %v881
        %v883 = vpop.f32.mrb[0].mxu0
        %884 = vmatprep.mubr.bf16.mxu0 0
        %885 = vmatmul.mubr.bf16.gmra.mrb[0].mxu0 %v685
        %v886 = vpop.f32.mrb[0].mxu0
        %v887 = vadd.f32 0.0, %v886
        %v888 = vpop.f32.mrb[0].mxu0
        %v889 = vpop.f32.mrb[0].mxu0
        %v890 = vadd.f32 0.0, %v889
        %v891 = vpop.f32.mrb[0].mxu0
        %892 = vmatprep.mubr.bf16.mxu0 0
        %893 = vmatmul.mubr.bf16.gmra.mrb[0].mxu0 %v688
        %v894 = vpop.f32.mrb[0].mxu0
        %v895 = vadd.f32 0.0, %v894
        %v896 = vpop.f32.mrb[0].mxu0
        %v897 = vpop.f32.mrb[0].mxu0
        %v898 = vadd.f32 0.0, %v897
        %v899 = vpop.f32.mrb[0].mxu0
        %900 = vmatprep.mubr.bf16.mxu0 0
        %901 = vmatmul.mubr.bf16.gmra.mrb[0].mxu0 %v691
        %v902 = vpop.f32.mrb[0].mxu0
        %v903 = vadd.f32 0.0, %v902
        %v904 = vpop.f32.mrb[0].mxu0
        %v905 = vpop.f32.mrb[0].mxu0
        %v906 = vadd.f32 0.0, %v905
        %v907 = vpop.f32.mrb[0].mxu0
        %908 = vmatprep.mubr.bf16.mxu0 0
        %909 = vmatmul.mubr.bf16.gmra.mrb[0].mxu0 %v694
        %v910 = vpop.f32.mrb[0].mxu0
        %v911 = vadd.f32 0.0, %v910
        %v912 = vpop.f32.mrb[0].mxu0
        %v913 = vpop.f32.mrb[0].mxu0
        %v914 = vadd.f32 0.0, %v913
        %v915 = vpop.f32.mrb[0].mxu0
        %916 = vmatprep.mubr.bf16.mxu0 0
        %917 = vmatmul.mubr.bf16.gmra.mrb[0].mxu0 %v697
        %v918 = vpop.f32.mrb[0].mxu0
        %v919 = vadd.f32 0.0, %v918
        %v920 = vpop.f32.mrb[0].mxu0
        %v921 = vpop.f32.mrb[0].mxu0
        %v922 = vadd.f32 0.0, %v921
        %v923 = vpop.f32.mrb[0].mxu0
        %924 = vmatprep.mubr.bf16.mxu0 0
        %925 = vmatmul.mubr.bf16.gmra.mrb[0].mxu0 %v700
        %v926 = vpop.f32.mrb[0].mxu0
        %v927 = vadd.f32 0.0, %v926
        %v928 = vpop.f32.mrb[0].mxu0
        %v929 = vpop.f32.mrb[0].mxu0
        %v930 = vadd.f32 0.0, %v929
        %v931 = vpop.f32.mrb[0].mxu0
        %932 = vmatprep.mubr.bf16.mxu0 0
        %933 = vmatmul.mubr.bf16.gmra.mrb[0].mxu0 %v703
        %v934 = vpop.f32.mrb[0].mxu0
        %v935 = vadd.f32 0.0, %v934
        %v936 = vpop.f32.mrb[0].mxu0
        %v937 = vpop.f32.mrb[0].mxu0
        %v938 = vadd.f32 0.0, %v937
        %v939 = vpop.f32.mrb[0].mxu0
        %940 = vmatprep.mubr.bf16.mxu0 0
        %941 = vmatmul.mubr.bf16.gmra.mrb[0].mxu0 %v706
        %v942 = vpop.f32.mrb[0].mxu0
        %v943 = vadd.f32 0.0, %v942
        %v944 = vpop.f32.mrb[0].mxu0
        %v945 = vpop.f32.mrb[0].mxu0
        %v946 = vadd.f32 0.0, %v945
        %v947 = vpop.f32.mrb[0].mxu0
        %948 = vmatprep.mubr.bf16.mxu0 0
        %949 = vmatmul.mubr.bf16.gmra.mrb[0].mxu0 %v709
        %v950 = vpop.f32.mrb[0].mxu0
        %v951 = vadd.f32 0.0, %v950
        %v952 = vpop.f32.mrb[0].mxu0
        %v953 = vpop.f32.mrb[0].mxu0
        %v954 = vadd.f32 0.0, %v953
        %v955 = vpop.f32.mrb[0].mxu0
        %956 = vmatprep.mubr.bf16.mxu0 0
        %957 = vmatmul.mubr.bf16.gmra.mrb[0].mxu0 %v712
        %v958 = vpop.f32.mrb[0].mxu0
        %v959 = vadd.f32 0.0, %v958
        %v960 = vpop.f32.mrb[0].mxu0
        %v961 = vpop.f32.mrb[0].mxu0
        %v962 = vadd.f32 0.0, %v961
        %v963 = vpop.f32.mrb[0].mxu0
        %964 = vmatprep.mubr.bf16.mxu0 0
        %965 = vmatmul.mubr.bf16.gmra.mrb[0].mxu0 %v715
        %v966 = vpop.f32.mrb[0].mxu0
        %v967 = vadd.f32 0.0, %v966
        %v968 = vpop.f32.mrb[0].mxu0
        %v969 = vpop.f32.mrb[0].mxu0
        %v970 = vadd.f32 0.0, %v969
        %v971 = vpop.f32.mrb[0].mxu0
        %972 = vmatprep.mubr.bf16.mxu0 0
        %973 = vmatmul.mubr.bf16.gmra.mrb[0].mxu0 %v718
        %v974 = vpop.f32.mrb[0].mxu0
        %v975 = vadd.f32 0.0, %v974
        %v976 = vpop.f32.mrb[0].mxu0
        %v977 = vpop.f32.mrb[0].mxu0
        %v978 = vadd.f32 0.0, %v977
        %v979 = vpop.f32.mrb[0].mxu0
        %980 = vmatprep.mubr.bf16.mxu0 0
        %981 = vmatmul.mubr.bf16.gmra.mrb[0].mxu0 %v721
        %v982 = vpop.f32.mrb[0].mxu0
        %v983 = vadd.f32 0.0, %v982
        %v984 = vpop.f32.mrb[0].mxu0
        %v985 = vpop.f32.mrb[0].mxu0
        %v986 = vadd.f32 0.0, %v985
        %v987 = vpop.f32.mrb[0].mxu0
        %988 = vmatprep.mubr.bf16.mxu0 0
        %989 = vmatmul.mubr.bf16.gmra.mrb[0].mxu0 %v724
        %v990 = vpop.f32.mrb[0].mxu0
        %v991 = vadd.f32 0.0, %v990
        %v992 = vpop.f32.mrb[0].mxu0
        %v993 = vpop.f32.mrb[0].mxu0
        %v994 = vadd.f32 0.0, %v993
        %v995 = vpop.f32.mrb[0].mxu0
        %996 = vmatprep.mubr.bf16.mxu0 0
        %997 = vmatmul.mubr.bf16.gmra.mrb[0].mxu0 %v727
        %v998 = vpop.f32.mrb[0].mxu0
        %v999 = vadd.f32 0.0, %v998
        %v1000 = vpop.f32.mrb[0].mxu0
        %v1001 = vpop.f32.mrb[0].mxu0
        %v1002 = vadd.f32 0.0, %v1001
        %v1003 = vpop.f32.mrb[0].mxu0
        %1004 = vmatprep.mubr.bf16.mxu0 0
        %1005 = vmatmul.mubr.bf16.gmra.mrb[0].mxu0 %v730
        %v1006 = vpop.f32.mrb[0].mxu0
        %v1007 = vadd.f32 0.0, %v1006
        %v1008 = vpop.f32.mrb[0].mxu0
        %v1009 = vpop.f32.mrb[0].mxu0
        %v1010 = vadd.f32 0.0, %v1009
        %v1011 = vpop.f32.mrb[0].mxu0
        %1012 = vmatprep.mubr.bf16.mxu0 0
        %1013 = vmatmul.mubr.bf16.gmra.mrb[0].mxu0 %v733
        %v1014 = vpop.f32.mrb[0].mxu0
        %v1015 = vadd.f32 0.0, %v1014
        %v1016 = vpop.f32.mrb[0].mxu0
        %v1017 = vpop.f32.mrb[0].mxu0
        %v1018 = vadd.f32 0.0, %v1017
        %v1019 = vpop.f32.mrb[0].mxu0
        %1020 = vmatprep.mubr.bf16.mxu0 0
        %1021 = vmatmul.mubr.bf16.gmra.mrb[0].mxu0 %v736
        %v1022 = vpop.f32.mrb[0].mxu0
        %v1023 = vadd.f32 0.0, %v1022
        %v1024 = vpop.f32.mrb[0].mxu0
        %v1025 = vpop.f32.mrb[0].mxu0
        %v1026 = vadd.f32 0.0, %v1025
        %v1027 = vpop.f32.mrb[0].mxu0
        %1028 = vmatprep.mubr.bf16.mxu0 0
        %1029 = vmatmul.mubr.bf16.gmra.mrb[0].mxu0 %v739
        %v1030 = vpop.f32.mrb[0].mxu0
        %v1031 = vadd.f32 0.0, %v1030
        %v1032 = vpop.f32.mrb[0].mxu0
        %v1033 = vpop.f32.mrb[0].mxu0
        %v1034 = vadd.f32 0.0, %v1033
        %v1035 = vpop.f32.mrb[0].mxu0
        %1036 = vdwg.mxu0
        %v1037 = vadd.f32 %v341, %v783
        %v1038 = vadd.f32 %v342, %v786
        %v1039 = vadd.f32 %v343, %v791
        %v1040 = vadd.f32 %v344, %v794
        %v1041 = vadd.f32 %v345, %v799
        %v1042 = vadd.f32 %v346, %v802
        %v1043 = vadd.f32 %v347, %v807
        %v1044 = vadd.f32 %v348, %v810
        %v1045 = vadd.f32 %v349, %v815
        %v1046 = vadd.f32 %v350, %v818
        %v1047 = vadd.f32 %v351, %v823
        %v1048 = vadd.f32 %v352, %v826
        %v1049 = vadd.f32 %v353, %v831
        %v1050 = vadd.f32 %v354, %v834
        %v1051 = vadd.f32 %v355, %v839
        %v1052 = vadd.f32 %v356, %v842
        %v1053 = vadd.f32 %v357, %v847
        %v1054 = vadd.f32 %v358, %v850
        %v1055 = vadd.f32 %v359, %v855
        %v1056 = vadd.f32 %v360, %v858
        %v1057 = vadd.f32 %v361, %v863
        %v1058 = vadd.f32 %v362, %v866
        %v1059 = vadd.f32 %v363, %v871
        %v1060 = vadd.f32 %v364, %v874
        %v1061 = vadd.f32 %v365, %v879
        %v1062 = vadd.f32 %v366, %v882
        %v1063 = vadd.f32 %v367, %v887
        %v1064 = vadd.f32 %v368, %v890
        %v1065 = vadd.f32 %v369, %v895
        %v1066 = vadd.f32 %v370, %v898
        %v1067 = vadd.f32 %v371, %v903
        %v1068 = vadd.f32 %v372, %v906
        %v1069 = vadd.f32 %v373, %v911
        %v1070 = vadd.f32 %v374, %v914
        %v1071 = vadd.f32 %v375, %v919
        %v1072 = vadd.f32 %v376, %v922
        %v1073 = vadd.f32 %v377, %v927
        %v1074 = vadd.f32 %v378, %v930
        %v1075 = vadd.f32 %v379, %v935
        %v1076 = vadd.f32 %v380, %v938
        %v1077 = vadd.f32 %v381, %v943
        %v1078 = vadd.f32 %v382, %v946
        %v1079 = vadd.f32 %v383, %v951
        %v1080 = vadd.f32 %v384, %v954
        %v1081 = vadd.f32 %v385, %v959
        %v1082 = vadd.f32 %v386, %v962
        %v1083 = vadd.f32 %v387, %v967
        %v1084 = vadd.f32 %v388, %v970
        %v1085 = vadd.f32 %v389, %v975
        %v1086 = vadd.f32 %v390, %v978
        %v1087 = vadd.f32 %v391, %v983
        %v1088 = vadd.f32 %v392, %v986
        %v1089 = vadd.f32 %v393, %v991
        %v1090 = vadd.f32 %v394, %v994
        %v1091 = vadd.f32 %v395, %v999
        %v1092 = vadd.f32 %v396, %v1002
        %v1093 = vadd.f32 %v397, %v1007
        %v1094 = vadd.f32 %v398, %v1010
        %v1095 = vadd.f32 %v399, %v1015
        %v1096 = vadd.f32 %v400, %v1018
        %v1097 = vadd.f32 %v401, %v1023
        %v1098 = vadd.f32 %v402, %v1026
        %v1099 = vadd.f32 %v403, %v1031
        %v1100 = vadd.f32 %v404, %v1034
        %vm1101 = vcmask 261120
        %1102 = vst.msk [vmem:[#allocation2] sm:$0xff] %vm1101, %v1037
        %1103 = vst.msk [vmem:[#allocation2 + $0x8] sm:$0xff] %vm1101, %v1038
        %1104 = vst.msk [vmem:[#allocation2 + $0x10] sm:$0xff] %vm1101, %v1039
        %1105 = vst.msk [vmem:[#allocation2 + $0x18] sm:$0xff] %vm1101, %v1040
        %1106 = vst.msk [vmem:[#allocation2 + $0x20] sm:$0xff] %vm1101, %v1041
        %1107 = vst.msk [vmem:[#allocation2 + $0x28] sm:$0xff] %vm1101, %v1042
        %1108 = vst.msk [vmem:[#allocation2 + $0x30] sm:$0xff] %vm1101, %v1043
        %1109 = vst.msk [vmem:[#allocation2 + $0x38] sm:$0xff] %vm1101, %v1044
        %1110 = vst.msk [vmem:[#allocation2 + $0x40] sm:$0xff] %vm1101, %v1045
        %1111 = vst.msk [vmem:[#allocation2 + $0x48] sm:$0xff] %vm1101, %v1046
        %1112 = vst.msk [vmem:[#allocation2 + $0x50] sm:$0xff] %vm1101, %v1047
        %1113 = vst.msk [vmem:[#allocation2 + $0x58] sm:$0xff] %vm1101, %v1048
        %1114 = vst.msk [vmem:[#allocation2 + $0x60] sm:$0xff] %vm1101, %v1049
        %1115 = vst.msk [vmem:[#allocation2 + $0x68] sm:$0xff] %vm1101, %v1050
        %1116 = vst.msk [vmem:[#allocation2 + $0x70] sm:$0xff] %vm1101, %v1051
        %1117 = vst.msk [vmem:[#allocation2 + $0x78] sm:$0xff] %vm1101, %v1052
        %1118 = vst.msk [vmem:[#allocation2 + $0x80] sm:$0xff] %vm1101, %v1053
        %1119 = vst.msk [vmem:[#allocation2 + $0x88] sm:$0xff] %vm1101, %v1054
        %1120 = vst.msk [vmem:[#allocation2 + $0x90] sm:$0xff] %vm1101, %v1055
        %1121 = vst.msk [vmem:[#allocation2 + $0x98] sm:$0xff] %vm1101, %v1056
        %1122 = vst.msk [vmem:[#allocation2 + $0xa0] sm:$0xff] %vm1101, %v1057
        %1123 = vst.msk [vmem:[#allocation2 + $0xa8] sm:$0xff] %vm1101, %v1058
        %1124 = vst.msk [vmem:[#allocation2 + $0xb0] sm:$0xff] %vm1101, %v1059
        %1125 = vst.msk [vmem:[#allocation2 + $0xb8] sm:$0xff] %vm1101, %v1060
        %1126 = vst.msk [vmem:[#allocation2 + $0xc0] sm:$0xff] %vm1101, %v1061
        %1127 = vst.msk [vmem:[#allocation2 + $0xc8] sm:$0xff] %vm1101, %v1062
        %1128 = vst.msk [vmem:[#allocation2 + $0xd0] sm:$0xff] %vm1101, %v1063
        %1129 = vst.msk [vmem:[#allocation2 + $0xd8] sm:$0xff] %vm1101, %v1064
        %1130 = vst.msk [vmem:[#allocation2 + $0xe0] sm:$0xff] %vm1101, %v1065
        %1131 = vst.msk [vmem:[#allocation2 + $0xe8] sm:$0xff] %vm1101, %v1066
        %1132 = vst.msk [vmem:[#allocation2 + $0xf0] sm:$0xff] %vm1101, %v1067
        %1133 = vst.msk [vmem:[#allocation2 + $0xf8] sm:$0xff] %vm1101, %v1068
        %1134 = vst.msk [vmem:[#allocation2 + $0x100] sm:$0xff] %vm1101, %v1069
        %1135 = vst.msk [vmem:[#allocation2 + $0x108] sm:$0xff] %vm1101, %v1070
        %1136 = vst.msk [vmem:[#allocation2 + $0x110] sm:$0xff] %vm1101, %v1071
        %1137 = vst.msk [vmem:[#allocation2 + $0x118] sm:$0xff] %vm1101, %v1072
        %1138 = vst.msk [vmem:[#allocation2 + $0x120] sm:$0xff] %vm1101, %v1073
        %1139 = vst.msk [vmem:[#allocation2 + $0x128] sm:$0xff] %vm1101, %v1074
        %1140 = vst.msk [vmem:[#allocation2 + $0x130] sm:$0xff] %vm1101, %v1075
        %1141 = vst.msk [vmem:[#allocation2 + $0x138] sm:$0xff] %vm1101, %v1076
        %1142 = vst.msk [vmem:[#allocation2 + $0x140] sm:$0xff] %vm1101, %v1077
        %1143 = vst.msk [vmem:[#allocation2 + $0x148] sm:$0xff] %vm1101, %v1078
        %1144 = vst.msk [vmem:[#allocation2 + $0x150] sm:$0xff] %vm1101, %v1079
        %1145 = vst.msk [vmem:[#allocation2 + $0x158] sm:$0xff] %vm1101, %v1080
        %1146 = vst.msk [vmem:[#allocation2 + $0x160] sm:$0xff] %vm1101, %v1081
        %1147 = vst.msk [vmem:[#allocation2 + $0x168] sm:$0xff] %vm1101, %v1082
        %1148 = vst.msk [vmem:[#allocation2 + $0x170] sm:$0xff] %vm1101, %v1083
        %1149 = vst.msk [vmem:[#allocation2 + $0x178] sm:$0xff] %vm1101, %v1084
        %1150 = vst.msk [vmem:[#allocation2 + $0x180] sm:$0xff] %vm1101, %v1085
        %1151 = vst.msk [vmem:[#allocation2 + $0x188] sm:$0xff] %vm1101, %v1086
        %1152 = vst.msk [vmem:[#allocation2 + $0x190] sm:$0xff] %vm1101, %v1087
        %1153 = vst.msk [vmem:[#allocation2 + $0x198] sm:$0xff] %vm1101, %v1088
        %1154 = vst.msk [vmem:[#allocation2 + $0x1a0] sm:$0xff] %vm1101, %v1089
        %1155 = vst.msk [vmem:[#allocation2 + $0x1a8] sm:$0xff] %vm1101, %v1090
        %1156 = vst.msk [vmem:[#allocation2 + $0x1b0] sm:$0xff] %vm1101, %v1091
        %1157 = vst.msk [vmem:[#allocation2 + $0x1b8] sm:$0xff] %vm1101, %v1092
        %1158 = vst.msk [vmem:[#allocation2 + $0x1c0] sm:$0xff] %vm1101, %v1093
        %1159 = vst.msk [vmem:[#allocation2 + $0x1c8] sm:$0xff] %vm1101, %v1094
        %1160 = vst.msk [vmem:[#allocation2 + $0x1d0] sm:$0xff] %vm1101, %v1095
        %1161 = vst.msk [vmem:[#allocation2 + $0x1d8] sm:$0xff] %vm1101, %v1096
        %1162 = vst.msk [vmem:[#allocation2 + $0x1e0] sm:$0xff] %vm1101, %v1097
        %1163 = vst.msk [vmem:[#allocation2 + $0x1e8] sm:$0xff] %vm1101, %v1098
        %1164 = vst.msk [vmem:[#allocation2 + $0x1f0] sm:$0xff] %vm1101, %v1099
        %1165 = vst.msk [vmem:[#allocation2 + $0x1f8] sm:$0xff] %vm1101, %v1100
        // Predicated region
        $region37: #{tpu_custom_call.1} parent=31 // pred_check
          %p1166 = pneg %p272
        $region38: #{tpu_custom_call.1} parent=31 // pred_check_branch
          %1168 = sbr.rel (%p1166) target = $region40
        $region39: #{tpu_custom_call.1} parent=31 // pred_region
          %v1169 = vld [vmem:[#allocation2] sm:$0xff]
          %v1170 = vld [vmem:[#allocation2 + $0x8] sm:$0xff]
          %v1171 = vld [vmem:[#allocation2 + $0x10] sm:$0xff]
          %v1172 = vld [vmem:[#allocation2 + $0x18] sm:$0xff]
          %v1173 = vld [vmem:[#allocation2 + $0x20] sm:$0xff]
          %v1174 = vld [vmem:[#allocation2 + $0x28] sm:$0xff]
          %v1175 = vld [vmem:[#allocation2 + $0x30] sm:$0xff]
          %v1176 = vld [vmem:[#allocation2 + $0x38] sm:$0xff]
          %v1177 = vld [vmem:[#allocation2 + $0x40] sm:$0xff]
          %v1178 = vld [vmem:[#allocation2 + $0x48] sm:$0xff]
          %v1179 = vld [vmem:[#allocation2 + $0x50] sm:$0xff]
          %v1180 = vld [vmem:[#allocation2 + $0x58] sm:$0xff]
          %v1181 = vld [vmem:[#allocation2 + $0x60] sm:$0xff]
          %v1182 = vld [vmem:[#allocation2 + $0x68] sm:$0xff]
          %v1183 = vld [vmem:[#allocation2 + $0x70] sm:$0xff]
          %v1184 = vld [vmem:[#allocation2 + $0x78] sm:$0xff]
          %v1185 = vld [vmem:[#allocation2 + $0x80] sm:$0xff]
          %v1186 = vld [vmem:[#allocation2 + $0x88] sm:$0xff]
          %v1187 = vld [vmem:[#allocation2 + $0x90] sm:$0xff]
          %v1188 = vld [vmem:[#allocation2 + $0x98] sm:$0xff]
          %v1189 = vld [vmem:[#allocation2 + $0xa0] sm:$0xff]
          %v1190 = vld [vmem:[#allocation2 + $0xa8] sm:$0xff]
          %v1191 = vld [vmem:[#allocation2 + $0xb0] sm:$0xff]
          %v1192 = vld [vmem:[#allocation2 + $0xb8] sm:$0xff]
          %v1193 = vld [vmem:[#allocation2 + $0xc0] sm:$0xff]
          %v1194 = vld [vmem:[#allocation2 + $0xc8] sm:$0xff]
          %v1195 = vld [vmem:[#allocation2 + $0xd0] sm:$0xff]
          %v1196 = vld [vmem:[#allocation2 + $0xd8] sm:$0xff]
          %v1197 = vld [vmem:[#allocation2 + $0xe0] sm:$0xff]
          %v1198 = vld [vmem:[#allocation2 + $0xe8] sm:$0xff]
          %v1199 = vld [vmem:[#allocation2 + $0xf0] sm:$0xff]
          %v1200 = vld [vmem:[#allocation2 + $0xf8] sm:$0xff]
          %v1201 = vld [vmem:[#allocation2 + $0x100] sm:$0xff]
          %v1202 = vld [vmem:[#allocation2 + $0x108] sm:$0xff]
          %v1203 = vld [vmem:[#allocation2 + $0x110] sm:$0xff]
          %v1204 = vld [vmem:[#allocation2 + $0x118] sm:$0xff]
          %v1205 = vld [vmem:[#allocation2 + $0x120] sm:$0xff]
          %v1206 = vld [vmem:[#allocation2 + $0x128] sm:$0xff]
          %v1207 = vld [vmem:[#allocation2 + $0x130] sm:$0xff]
          %v1208 = vld [vmem:[#allocation2 + $0x138] sm:$0xff]
          %v1209 = vld [vmem:[#allocation2 + $0x140] sm:$0xff]
          %v1210 = vld [vmem:[#allocation2 + $0x148] sm:$0xff]
          %v1211 = vld [vmem:[#allocation2 + $0x150] sm:$0xff]
          %v1212 = vld [vmem:[#allocation2 + $0x158] sm:$0xff]
          %v1213 = vld [vmem:[#allocation2 + $0x160] sm:$0xff]
          %v1214 = vld [vmem:[#allocation2 + $0x168] sm:$0xff]
          %v1215 = vld [vmem:[#allocation2 + $0x170] sm:$0xff]
          %v1216 = vld [vmem:[#allocation2 + $0x178] sm:$0xff]
          %v1217 = vld [vmem:[#allocation2 + $0x180] sm:$0xff]
          %v1218 = vld [vmem:[#allocation2 + $0x188] sm:$0xff]
          %v1219 = vld [vmem:[#allocation2 + $0x190] sm:$0xff]
          %v1220 = vld [vmem:[#allocation2 + $0x198] sm:$0xff]
          %v1221 = vld [vmem:[#allocation2 + $0x1a0] sm:$0xff]
          %v1222 = vld [vmem:[#allocation2 + $0x1a8] sm:$0xff]
          %v1223 = vld [vmem:[#allocation2 + $0x1b0] sm:$0xff]
          %v1224 = vld [vmem:[#allocation2 + $0x1b8] sm:$0xff]
          %v1225 = vld [vmem:[#allocation2 + $0x1c0] sm:$0xff]
          %v1226 = vld [vmem:[#allocation2 + $0x1c8] sm:$0xff]
          %v1227 = vld [vmem:[#allocation2 + $0x1d0] sm:$0xff]
          %v1228 = vld [vmem:[#allocation2 + $0x1d8] sm:$0xff]
          %v1229 = vld [vmem:[#allocation2 + $0x1e0] sm:$0xff]
          %v1230 = vld [vmem:[#allocation2 + $0x1e8] sm:$0xff]
          %v1231 = vld [vmem:[#allocation2 + $0x1f0] sm:$0xff]
          %v1232 = vld [vmem:[#allocation2 + $0x1f8] sm:$0xff]
          %v1233 = vld [vmem:[%s265] sm:$0x1]
          %v1235 = vlaneseq
          %v1236 = vshrl.u32 %v1235, 7
          %v1237 = vsub.s32 0, %v1236
          %v1238 = vrot.slane %v1233, %v1237
          %v1240 = vadd.f32 %v1169, %v1238
          %v1241 = vadd.f32 %v1170, %v1238
          %v1242 = vadd.f32 %v1171, %v1238
          %v1243 = vadd.f32 %v1172, %v1238
          %v1244 = vadd.f32 %v1173, %v1238
          %v1245 = vadd.f32 %v1174, %v1238
          %v1246 = vadd.f32 %v1175, %v1238
          %v1247 = vadd.f32 %v1176, %v1238
          %v1248 = vadd.f32 %v1177, %v1238
          %v1249 = vadd.f32 %v1178, %v1238
          %v1250 = vadd.f32 %v1179, %v1238
          %v1251 = vadd.f32 %v1180, %v1238
          %v1252 = vadd.f32 %v1181, %v1238
          %v1253 = vadd.f32 %v1182, %v1238
          %v1254 = vadd.f32 %v1183, %v1238
          %v1255 = vadd.f32 %v1184, %v1238
          %v1256 = vadd.f32 %v1185, %v1238
          %v1257 = vadd.f32 %v1186, %v1238
          %v1258 = vadd.f32 %v1187, %v1238
          %v1259 = vadd.f32 %v1188, %v1238
          %v1260 = vadd.f32 %v1189, %v1238
          %v1261 = vadd.f32 %v1190, %v1238
          %v1262 = vadd.f32 %v1191, %v1238
          %v1263 = vadd.f32 %v1192, %v1238
          %v1264 = vadd.f32 %v1193, %v1238
          %v1265 = vadd.f32 %v1194, %v1238
          %v1266 = vadd.f32 %v1195, %v1238
          %v1267 = vadd.f32 %v1196, %v1238
          %v1268 = vadd.f32 %v1197, %v1238
          %v1269 = vadd.f32 %v1198, %v1238
          %v1270 = vadd.f32 %v1199, %v1238
          %v1271 = vadd.f32 %v1200, %v1238
          %v1272 = vadd.f32 %v1201, %v1238
          %v1273 = vadd.f32 %v1202, %v1238
          %v1274 = vadd.f32 %v1203, %v1238
          %v1275 = vadd.f32 %v1204, %v1238
          %v1276 = vadd.f32 %v1205, %v1238
          %v1277 = vadd.f32 %v1206, %v1238
          %v1278 = vadd.f32 %v1207, %v1238
          %v1279 = vadd.f32 %v1208, %v1238
          %v1280 = vadd.f32 %v1209, %v1238
          %v1281 = vadd.f32 %v1210, %v1238
          %v1282 = vadd.f32 %v1211, %v1238
          %v1283 = vadd.f32 %v1212, %v1238
          %v1284 = vadd.f32 %v1213, %v1238
          %v1285 = vadd.f32 %v1214, %v1238
          %v1286 = vadd.f32 %v1215, %v1238
          %v1287 = vadd.f32 %v1216, %v1238
          %v1288 = vadd.f32 %v1217, %v1238
          %v1289 = vadd.f32 %v1218, %v1238
          %v1290 = vadd.f32 %v1219, %v1238
          %v1291 = vadd.f32 %v1220, %v1238
          %v1292 = vadd.f32 %v1221, %v1238
          %v1293 = vadd.f32 %v1222, %v1238
          %v1294 = vadd.f32 %v1223, %v1238
          %v1295 = vadd.f32 %v1224, %v1238
          %v1296 = vadd.f32 %v1225, %v1238
          %v1297 = vadd.f32 %v1226, %v1238
          %v1298 = vadd.f32 %v1227, %v1238
          %v1299 = vadd.f32 %v1228, %v1238
          %v1300 = vadd.f32 %v1229, %v1238
          %v1301 = vadd.f32 %v1230, %v1238
          %v1302 = vadd.f32 %v1231, %v1238
          %v1303 = vadd.f32 %v1232, %v1238
          %v1304 = vpack.c.bf16 %v1241, %v1240
          %v1305 = vpack.c.bf16 %v1243, %v1242
          %v1306 = vpack.c.bf16 %v1245, %v1244
          %v1307 = vpack.c.bf16 %v1247, %v1246
          %v1308 = vpack.c.bf16 %v1249, %v1248
          %v1309 = vpack.c.bf16 %v1251, %v1250
          %v1310 = vpack.c.bf16 %v1253, %v1252
          %v1311 = vpack.c.bf16 %v1255, %v1254
          %v1312 = vpack.c.bf16 %v1257, %v1256
          %v1313 = vpack.c.bf16 %v1259, %v1258
          %v1314 = vpack.c.bf16 %v1261, %v1260
          %v1315 = vpack.c.bf16 %v1263, %v1262
          %v1316 = vpack.c.bf16 %v1265, %v1264
          %v1317 = vpack.c.bf16 %v1267, %v1266
          %v1318 = vpack.c.bf16 %v1269, %v1268
          %v1319 = vpack.c.bf16 %v1271, %v1270
          %v1320 = vpack.c.bf16 %v1273, %v1272
          %v1321 = vpack.c.bf16 %v1275, %v1274
          %v1322 = vpack.c.bf16 %v1277, %v1276
          %v1323 = vpack.c.bf16 %v1279, %v1278
          %v1324 = vpack.c.bf16 %v1281, %v1280
          %v1325 = vpack.c.bf16 %v1283, %v1282
          %v1326 = vpack.c.bf16 %v1285, %v1284
          %v1327 = vpack.c.bf16 %v1287, %v1286
          %v1328 = vpack.c.bf16 %v1289, %v1288
          %v1329 = vpack.c.bf16 %v1291, %v1290
          %v1330 = vpack.c.bf16 %v1293, %v1292
          %v1331 = vpack.c.bf16 %v1295, %v1294
          %v1332 = vpack.c.bf16 %v1297, %v1296
          %v1333 = vpack.c.bf16 %v1299, %v1298
          %v1334 = vpack.c.bf16 %v1301, %v1300
          %v1335 = vpack.c.bf16 %v1303, %v1302
          %v1368 = vunpack.c.l.b16 %v1304
          %v1369 = vunpack.c.h.b16 %v1304
          %v1370 = vunpack.c.l.b16 %v1305
          %v1371 = vunpack.c.h.b16 %v1305
          %v1372 = vunpack.c.l.b16 %v1306
          %v1373 = vunpack.c.h.b16 %v1306
          %v1374 = vunpack.c.l.b16 %v1307
          %v1375 = vunpack.c.h.b16 %v1307
          %v1376 = vunpack.c.l.b16 %v1308
          %v1377 = vunpack.c.h.b16 %v1308
          %v1378 = vunpack.c.l.b16 %v1309
          %v1379 = vunpack.c.h.b16 %v1309
          %v1380 = vunpack.c.l.b16 %v1310
          %v1381 = vunpack.c.h.b16 %v1310
          %v1382 = vunpack.c.l.b16 %v1311
          %v1383 = vunpack.c.h.b16 %v1311
          %v1384 = vunpack.c.l.b16 %v1312
          %v1385 = vunpack.c.h.b16 %v1312
          %v1386 = vunpack.c.l.b16 %v1313
          %v1387 = vunpack.c.h.b16 %v1313
          %v1388 = vunpack.c.l.b16 %v1314
          %v1389 = vunpack.c.h.b16 %v1314
          %v1390 = vunpack.c.l.b16 %v1315
          %v1391 = vunpack.c.h.b16 %v1315
          %v1392 = vunpack.c.l.b16 %v1316
          %v1393 = vunpack.c.h.b16 %v1316
          %v1394 = vunpack.c.l.b16 %v1317
          %v1395 = vunpack.c.h.b16 %v1317
          %v1396 = vunpack.c.l.b16 %v1318
          %v1397 = vunpack.c.h.b16 %v1318
          %v1398 = vunpack.c.l.b16 %v1319
          %v1399 = vunpack.c.h.b16 %v1319
          %v1400 = vunpack.c.l.b16 %v1320
          %v1401 = vunpack.c.h.b16 %v1320
          %v1402 = vunpack.c.l.b16 %v1321
          %v1403 = vunpack.c.h.b16 %v1321
          %v1404 = vunpack.c.l.b16 %v1322
          %v1405 = vunpack.c.h.b16 %v1322
          %v1406 = vunpack.c.l.b16 %v1323
          %v1407 = vunpack.c.h.b16 %v1323
          %v1408 = vunpack.c.l.b16 %v1324
          %v1409 = vunpack.c.h.b16 %v1324
          %v1410 = vunpack.c.l.b16 %v1325
          %v1411 = vunpack.c.h.b16 %v1325
          %v1412 = vunpack.c.l.b16 %v1326
          %v1413 = vunpack.c.h.b16 %v1326
          %v1414 = vunpack.c.l.b16 %v1327
          %v1415 = vunpack.c.h.b16 %v1327
          %v1416 = vunpack.c.l.b16 %v1328
          %v1417 = vunpack.c.h.b16 %v1328
          %v1418 = vunpack.c.l.b16 %v1329
          %v1419 = vunpack.c.h.b16 %v1329
          %v1420 = vunpack.c.l.b16 %v1330
          %v1421 = vunpack.c.h.b16 %v1330
          %v1422 = vunpack.c.l.b16 %v1331
          %v1423 = vunpack.c.h.b16 %v1331
          %v1424 = vunpack.c.l.b16 %v1332
          %v1425 = vunpack.c.h.b16 %v1332
          %v1426 = vunpack.c.l.b16 %v1333
          %v1427 = vunpack.c.h.b16 %v1333
          %v1428 = vunpack.c.l.b16 %v1334
          %v1429 = vunpack.c.h.b16 %v1334
          %v1430 = vunpack.c.l.b16 %v1335
          %v1431 = vunpack.c.h.b16 %v1335
          %v1432 = vpack.c.b16 %v1368, %v1368
          %v1433 = vpack.c.b16 %v1369, %v1369
          %v1434 = vpack.c.b16 %v1370, %v1370
          %v1435 = vpack.c.b16 %v1371, %v1371
          %v1436 = vpack.c.b16 %v1372, %v1372
          %v1437 = vpack.c.b16 %v1373, %v1373
          %v1438 = vpack.c.b16 %v1374, %v1374
          %v1439 = vpack.c.b16 %v1375, %v1375
          %v1440 = vpack.c.b16 %v1376, %v1376
          %v1441 = vpack.c.b16 %v1377, %v1377
          %v1442 = vpack.c.b16 %v1378, %v1378
          %v1443 = vpack.c.b16 %v1379, %v1379
          %v1444 = vpack.c.b16 %v1380, %v1380
          %v1445 = vpack.c.b16 %v1381, %v1381
          %v1446 = vpack.c.b16 %v1382, %v1382
          %v1447 = vpack.c.b16 %v1383, %v1383
          %v1448 = vpack.c.b16 %v1384, %v1384
          %v1449 = vpack.c.b16 %v1385, %v1385
          %v1450 = vpack.c.b16 %v1386, %v1386
          %v1451 = vpack.c.b16 %v1387, %v1387
          %v1452 = vpack.c.b16 %v1388, %v1388
          %v1453 = vpack.c.b16 %v1389, %v1389
          %v1454 = vpack.c.b16 %v1390, %v1390
          %v1455 = vpack.c.b16 %v1391, %v1391
          %v1456 = vpack.c.b16 %v1392, %v1392
          %v1457 = vpack.c.b16 %v1393, %v1393
          %v1458 = vpack.c.b16 %v1394, %v1394
          %v1459 = vpack.c.b16 %v1395, %v1395
          %v1460 = vpack.c.b16 %v1396, %v1396
          %v1461 = vpack.c.b16 %v1397, %v1397
          %v1462 = vpack.c.b16 %v1398, %v1398
          %v1463 = vpack.c.b16 %v1399, %v1399
          %v1464 = vpack.c.b16 %v1400, %v1400
          %v1465 = vpack.c.b16 %v1401, %v1401
          %v1466 = vpack.c.b16 %v1402, %v1402
          %v1467 = vpack.c.b16 %v1403, %v1403
          %v1468 = vpack.c.b16 %v1404, %v1404
          %v1469 = vpack.c.b16 %v1405, %v1405
          %v1470 = vpack.c.b16 %v1406, %v1406
          %v1471 = vpack.c.b16 %v1407, %v1407
          %v1472 = vpack.c.b16 %v1408, %v1408
          %v1473 = vpack.c.b16 %v1409, %v1409
          %v1474 = vpack.c.b16 %v1410, %v1410
          %v1475 = vpack.c.b16 %v1411, %v1411
          %v1476 = vpack.c.b16 %v1412, %v1412
          %v1477 = vpack.c.b16 %v1413, %v1413
          %v1478 = vpack.c.b16 %v1414, %v1414
          %v1479 = vpack.c.b16 %v1415, %v1415
          %v1480 = vpack.c.b16 %v1416, %v1416
          %v1481 = vpack.c.b16 %v1417, %v1417
          %v1482 = vpack.c.b16 %v1418, %v1418
          %v1483 = vpack.c.b16 %v1419, %v1419
          %v1484 = vpack.c.b16 %v1420, %v1420
          %v1485 = vpack.c.b16 %v1421, %v1421
          %v1486 = vpack.c.b16 %v1422, %v1422
          %v1487 = vpack.c.b16 %v1423, %v1423
          %v1488 = vpack.c.b16 %v1424, %v1424
          %v1489 = vpack.c.b16 %v1425, %v1425
          %v1490 = vpack.c.b16 %v1426, %v1426
          %v1491 = vpack.c.b16 %v1427, %v1427
          %v1492 = vpack.c.b16 %v1428, %v1428
          %v1493 = vpack.c.b16 %v1429, %v1429
          %v1494 = vpack.c.b16 %v1430, %v1430
          %v1495 = vpack.c.b16 %v1431, %v1431
          %vm1560 = vcmask 257024
          %1561 = vst.msk [vmem:[%s236] sm:$0xf] %vm1560, %v1432
          %1562 = vst.msk [vmem:[%s236 + $0x4] sm:$0xf] %vm1560, %v1433
          %1563 = vst.msk [vmem:[%s236 + $0x8] sm:$0xf] %vm1560, %v1434
          %1564 = vst.msk [vmem:[%s236 + $0xc] sm:$0xf] %vm1560, %v1435
          %1565 = vst.msk [vmem:[%s236 + $0x10] sm:$0xf] %vm1560, %v1436
          %1566 = vst.msk [vmem:[%s236 + $0x14] sm:$0xf] %vm1560, %v1437
          %1567 = vst.msk [vmem:[%s236 + $0x18] sm:$0xf] %vm1560, %v1438
          %1568 = vst.msk [vmem:[%s236 + $0x1c] sm:$0xf] %vm1560, %v1439
          %1569 = vst.msk [vmem:[%s236 + $0x20] sm:$0xf] %vm1560, %v1440
          %1570 = vst.msk [vmem:[%s236 + $0x24] sm:$0xf] %vm1560, %v1441
          %1571 = vst.msk [vmem:[%s236 + $0x28] sm:$0xf] %vm1560, %v1442
          %1572 = vst.msk [vmem:[%s236 + $0x2c] sm:$0xf] %vm1560, %v1443
          %1573 = vst.msk [vmem:[%s236 + $0x30] sm:$0xf] %vm1560, %v1444
          %1574 = vst.msk [vmem:[%s236 + $0x34] sm:$0xf] %vm1560, %v1445
          %1575 = vst.msk [vmem:[%s236 + $0x38] sm:$0xf] %vm1560, %v1446
          %1576 = vst.msk [vmem:[%s236 + $0x3c] sm:$0xf] %vm1560, %v1447
          %1577 = vst.msk [vmem:[%s236 + $0x40] sm:$0xf] %vm1560, %v1448
          %1578 = vst.msk [vmem:[%s236 + $0x44] sm:$0xf] %vm1560, %v1449
          %1579 = vst.msk [vmem:[%s236 + $0x48] sm:$0xf] %vm1560, %v1450
          %1580 = vst.msk [vmem:[%s236 + $0x4c] sm:$0xf] %vm1560, %v1451
          %1581 = vst.msk [vmem:[%s236 + $0x50] sm:$0xf] %vm1560, %v1452
          %1582 = vst.msk [vmem:[%s236 + $0x54] sm:$0xf] %vm1560, %v1453
          %1583 = vst.msk [vmem:[%s236 + $0x58] sm:$0xf] %vm1560, %v1454
          %1584 = vst.msk [vmem:[%s236 + $0x5c] sm:$0xf] %vm1560, %v1455
          %1585 = vst.msk [vmem:[%s236 + $0x60] sm:$0xf] %vm1560, %v1456
          %1586 = vst.msk [vmem:[%s236 + $0x64] sm:$0xf] %vm1560, %v1457
          %1587 = vst.msk [vmem:[%s236 + $0x68] sm:$0xf] %vm1560, %v1458
          %1588 = vst.msk [vmem:[%s236 + $0x6c] sm:$0xf] %vm1560, %v1459
          %1589 = vst.msk [vmem:[%s236 + $0x70] sm:$0xf] %vm1560, %v1460
          %1590 = vst.msk [vmem:[%s236 + $0x74] sm:$0xf] %vm1560, %v1461
          %1591 = vst.msk [vmem:[%s236 + $0x78] sm:$0xf] %vm1560, %v1462
          %1592 = vst.msk [vmem:[%s236 + $0x7c] sm:$0xf] %vm1560, %v1463
          %1593 = vst.msk [vmem:[%s236 + $0x80] sm:$0xf] %vm1560, %v1464
          %1594 = vst.msk [vmem:[%s236 + $0x84] sm:$0xf] %vm1560, %v1465
          %1595 = vst.msk [vmem:[%s236 + $0x88] sm:$0xf] %vm1560, %v1466
          %1596 = vst.msk [vmem:[%s236 + $0x8c] sm:$0xf] %vm1560, %v1467
          %1597 = vst.msk [vmem:[%s236 + $0x90] sm:$0xf] %vm1560, %v1468
          %1598 = vst.msk [vmem:[%s236 + $0x94] sm:$0xf] %vm1560, %v1469
          %1599 = vst.msk [vmem:[%s236 + $0x98] sm:$0xf] %vm1560, %v1470
          %1600 = vst.msk [vmem:[%s236 + $0x9c] sm:$0xf] %vm1560, %v1471
          %1601 = vst.msk [vmem:[%s236 + $0xa0] sm:$0xf] %vm1560, %v1472
          %1602 = vst.msk [vmem:[%s236 + $0xa4] sm:$0xf] %vm1560, %v1473
          %1603 = vst.msk [vmem:[%s236 + $0xa8] sm:$0xf] %vm1560, %v1474
          %1604 = vst.msk [vmem:[%s236 + $0xac] sm:$0xf] %vm1560, %v1475
          %1605 = vst.msk [vmem:[%s236 + $0xb0] sm:$0xf] %vm1560, %v1476
          %1606 = vst.msk [vmem:[%s236 + $0xb4] sm:$0xf] %vm1560, %v1477
          %1607 = vst.msk [vmem:[%s236 + $0xb8] sm:$0xf] %vm1560, %v1478
          %1608 = vst.msk [vmem:[%s236 + $0xbc] sm:$0xf] %vm1560, %v1479
          %1609 = vst.msk [vmem:[%s236 + $0xc0] sm:$0xf] %vm1560, %v1480
          %1610 = vst.msk [vmem:[%s236 + $0xc4] sm:$0xf] %vm1560, %v1481
          %1611 = vst.msk [vmem:[%s236 + $0xc8] sm:$0xf] %vm1560, %v1482
          %1612 = vst.msk [vmem:[%s236 + $0xcc] sm:$0xf] %vm1560, %v1483
          %1613 = vst.msk [vmem:[%s236 + $0xd0] sm:$0xf] %vm1560, %v1484
          %1614 = vst.msk [vmem:[%s236 + $0xd4] sm:$0xf] %vm1560, %v1485
          %1615 = vst.msk [vmem:[%s236 + $0xd8] sm:$0xf] %vm1560, %v1486
          %1616 = vst.msk [vmem:[%s236 + $0xdc] sm:$0xf] %vm1560, %v1487
          %1617 = vst.msk [vmem:[%s236 + $0xe0] sm:$0xf] %vm1560, %v1488
          %1618 = vst.msk [vmem:[%s236 + $0xe4] sm:$0xf] %vm1560, %v1489
          %1619 = vst.msk [vmem:[%s236 + $0xe8] sm:$0xf] %vm1560, %v1490
          %1620 = vst.msk [vmem:[%s236 + $0xec] sm:$0xf] %vm1560, %v1491
          %1621 = vst.msk [vmem:[%s236 + $0xf0] sm:$0xf] %vm1560, %v1492
          %1622 = vst.msk [vmem:[%s236 + $0xf4] sm:$0xf] %vm1560, %v1493
          %1623 = vst.msk [vmem:[%s236 + $0xf8] sm:$0xf] %vm1560, %v1494
          %1624 = vst.msk [vmem:[%s236 + $0xfc] sm:$0xf] %vm1560, %v1495
        $region40: #{tpu_custom_call.1} parent=31 // pred_fallthru
          _
        %s1625 = sand.u32 %s125, 1
        %s1626 = sand.u32 %s125, 1
        %s1627 = smul.addr %s1626, 256
        %s1628 = scalar_lea.vmem [#allocation3], %s1627
        // Predicated region
        $region41: #{tpu_custom_call.1} parent=31 // pred_check
          %p1629 = pneg %p135
        $region42: #{tpu_custom_call.1} parent=31 // pred_check_branch
          %1631 = sbr.rel (%p1629) target = $region44
        $region43: #{tpu_custom_call.1} parent=31 // pred_region
          %s1632 = smul.u32 64, %s19
          %s1633 = ssub.s32 5408, %s1632
          %p1634 = scmp.lt.s32.totalorder %s1633, 64
          %s1635 = scalar_select %p1634, %s1633, 64
          %s1636 = smul.u32 64, %s1635
          %p1637 = scmp.ne.s32.totalorder 0, %s1636
          %s1638 = sadd.s32 %s20, %s1632
          %s1639 = smul.addr %s1638, 4
          %s1640 = scalar_lea.vmem %s3, %s1639
          // Predicated region
          $region45: #{tpu_custom_call.1} parent=43 // pred_check
            %p1641 = pneg %p1637
          $region46: #{tpu_custom_call.1} parent=43 // pred_check_branch
            %1643 = sbr.rel (%p1641) target = $region48
          $region47: #{tpu_custom_call.1} parent=43 // pred_region
            // Predicated region
            $region49: #{tpu_custom_call.1} parent=47 // pred_check
              _
            $region50: #{tpu_custom_call.1} parent=47 // pred_check_branch
              %1645 = sbr.rel target = $region52
            $region51: #{tpu_custom_call.1} parent=47 // pred_region
              // Predicated region
              $region71: #{tpu_custom_call.1} parent=51 // pred_check
                _
              $region72: #{tpu_custom_call.1} parent=51 // pred_check_branch
                %1820 = sbr.rel (0) target = $region74
              $region73: #{tpu_custom_call.1} parent=51 // pred_region
                %s1822 = sshrl.u32 %s1635, 6
                // While loop
                $region75: #{tpu_custom_call.1} parent=73 // loop_pre_header
                  _
                $region76: #{tpu_custom_call.1} parent=73 // loop_header
                  %s1824 = sphi 0, %s1826
                  %p1825 = scmp.ge.s32.totalorder %s1824, %s1822
                  %s1829 = sphi 0, %s1962
                  %s1830 = sphi %s1628, %s1965
                  %s1831 = sphi %s1640, %s1966
                $region77: #{tpu_custom_call.1} parent=73 // loop_header_branch
                  %1828 = sbr.rel (%p1825) target = $region81
                $region78: #{tpu_custom_call.1} parent=73 // loop_body
                  %v1832 = vld [vmem:[%s1830] sm:$0xf]
                  %1833 = vst [vmem:[%s1831] sm:$0xf] %v1832
                  %v1834 = vld [vmem:[%s1830 + $0x4] sm:$0xf]
                  %1835 = vst [vmem:[%s1831 + $0x4] sm:$0xf] %v1834
                  %v1836 = vld [vmem:[%s1830 + $0x8] sm:$0xf]
                  %1837 = vst [vmem:[%s1831 + $0x8] sm:$0xf] %v1836
                  %v1838 = vld [vmem:[%s1830 + $0xc] sm:$0xf]
                  %1839 = vst [vmem:[%s1831 + $0xc] sm:$0xf] %v1838
                  %v1840 = vld [vmem:[%s1830 + $0x10] sm:$0xf]
                  %1841 = vst [vmem:[%s1831 + $0x10] sm:$0xf] %v1840
                  %v1842 = vld [vmem:[%s1830 + $0x14] sm:$0xf]
                  %1843 = vst [vmem:[%s1831 + $0x14] sm:$0xf] %v1842
                  %v1844 = vld [vmem:[%s1830 + $0x18] sm:$0xf]
                  %1845 = vst [vmem:[%s1831 + $0x18] sm:$0xf] %v1844
                  %v1846 = vld [vmem:[%s1830 + $0x1c] sm:$0xf]
                  %1847 = vst [vmem:[%s1831 + $0x1c] sm:$0xf] %v1846
                  %v1848 = vld [vmem:[%s1830 + $0x20] sm:$0xf]
                  %1849 = vst [vmem:[%s1831 + $0x20] sm:$0xf] %v1848
                  %v1850 = vld [vmem:[%s1830 + $0x24] sm:$0xf]
                  %1851 = vst [vmem:[%s1831 + $0x24] sm:$0xf] %v1850
                  %v1852 = vld [vmem:[%s1830 + $0x28] sm:$0xf]
                  %1853 = vst [vmem:[%s1831 + $0x28] sm:$0xf] %v1852
                  %v1854 = vld [vmem:[%s1830 + $0x2c] sm:$0xf]
                  %1855 = vst [vmem:[%s1831 + $0x2c] sm:$0xf] %v1854
                  %v1856 = vld [vmem:[%s1830 + $0x30] sm:$0xf]
                  %1857 = vst [vmem:[%s1831 + $0x30] sm:$0xf] %v1856
                  %v1858 = vld [vmem:[%s1830 + $0x34] sm:$0xf]
                  %1859 = vst [vmem:[%s1831 + $0x34] sm:$0xf] %v1858
                  %v1860 = vld [vmem:[%s1830 + $0x38] sm:$0xf]
                  %1861 = vst [vmem:[%s1831 + $0x38] sm:$0xf] %v1860
                  %v1862 = vld [vmem:[%s1830 + $0x3c] sm:$0xf]
                  %1863 = vst [vmem:[%s1831 + $0x3c] sm:$0xf] %v1862
                  %v1864 = vld [vmem:[%s1830 + $0x40] sm:$0xf]
                  %1865 = vst [vmem:[%s1831 + $0x40] sm:$0xf] %v1864
                  %v1866 = vld [vmem:[%s1830 + $0x44] sm:$0xf]
                  %1867 = vst [vmem:[%s1831 + $0x44] sm:$0xf] %v1866
                  %v1868 = vld [vmem:[%s1830 + $0x48] sm:$0xf]
                  %1869 = vst [vmem:[%s1831 + $0x48] sm:$0xf] %v1868
                  %v1870 = vld [vmem:[%s1830 + $0x4c] sm:$0xf]
                  %1871 = vst [vmem:[%s1831 + $0x4c] sm:$0xf] %v1870
                  %v1872 = vld [vmem:[%s1830 + $0x50] sm:$0xf]
                  %1873 = vst [vmem:[%s1831 + $0x50] sm:$0xf] %v1872
                  %v1874 = vld [vmem:[%s1830 + $0x54] sm:$0xf]
                  %1875 = vst [vmem:[%s1831 + $0x54] sm:$0xf] %v1874
                  %v1876 = vld [vmem:[%s1830 + $0x58] sm:$0xf]
                  %1877 = vst [vmem:[%s1831 + $0x58] sm:$0xf] %v1876
                  %v1878 = vld [vmem:[%s1830 + $0x5c] sm:$0xf]
                  %1879 = vst [vmem:[%s1831 + $0x5c] sm:$0xf] %v1878
                  %v1880 = vld [vmem:[%s1830 + $0x60] sm:$0xf]
                  %1881 = vst [vmem:[%s1831 + $0x60] sm:$0xf] %v1880
                  %v1882 = vld [vmem:[%s1830 + $0x64] sm:$0xf]
                  %1883 = vst [vmem:[%s1831 + $0x64] sm:$0xf] %v1882
                  %v1884 = vld [vmem:[%s1830 + $0x68] sm:$0xf]
                  %1885 = vst [vmem:[%s1831 + $0x68] sm:$0xf] %v1884
                  %v1886 = vld [vmem:[%s1830 + $0x6c] sm:$0xf]
                  %1887 = vst [vmem:[%s1831 + $0x6c] sm:$0xf] %v1886
                  %v1888 = vld [vmem:[%s1830 + $0x70] sm:$0xf]
                  %1889 = vst [vmem:[%s1831 + $0x70] sm:$0xf] %v1888
                  %v1890 = vld [vmem:[%s1830 + $0x74] sm:$0xf]
                  %1891 = vst [vmem:[%s1831 + $0x74] sm:$0xf] %v1890
                  %v1892 = vld [vmem:[%s1830 + $0x78] sm:$0xf]
                  %1893 = vst [vmem:[%s1831 + $0x78] sm:$0xf] %v1892
                  %v1894 = vld [vmem:[%s1830 + $0x7c] sm:$0xf]
                  %1895 = vst [vmem:[%s1831 + $0x7c] sm:$0xf] %v1894
                  %v1896 = vld [vmem:[%s1830 + $0x80] sm:$0xf]
                  %1897 = vst [vmem:[%s1831 + $0x80] sm:$0xf] %v1896
                  %v1898 = vld [vmem:[%s1830 + $0x84] sm:$0xf]
                  %1899 = vst [vmem:[%s1831 + $0x84] sm:$0xf] %v1898
                  %v1900 = vld [vmem:[%s1830 + $0x88] sm:$0xf]
                  %1901 = vst [vmem:[%s1831 + $0x88] sm:$0xf] %v1900
                  %v1902 = vld [vmem:[%s1830 + $0x8c] sm:$0xf]
                  %1903 = vst [vmem:[%s1831 + $0x8c] sm:$0xf] %v1902
                  %v1904 = vld [vmem:[%s1830 + $0x90] sm:$0xf]
                  %1905 = vst [vmem:[%s1831 + $0x90] sm:$0xf] %v1904
                  %v1906 = vld [vmem:[%s1830 + $0x94] sm:$0xf]
                  %1907 = vst [vmem:[%s1831 + $0x94] sm:$0xf] %v1906
                  %v1908 = vld [vmem:[%s1830 + $0x98] sm:$0xf]
                  %1909 = vst [vmem:[%s1831 + $0x98] sm:$0xf] %v1908
                  %v1910 = vld [vmem:[%s1830 + $0x9c] sm:$0xf]
                  %1911 = vst [vmem:[%s1831 + $0x9c] sm:$0xf] %v1910
                  %v1912 = vld [vmem:[%s1830 + $0xa0] sm:$0xf]
                  %1913 = vst [vmem:[%s1831 + $0xa0] sm:$0xf] %v1912
                  %v1914 = vld [vmem:[%s1830 + $0xa4] sm:$0xf]
                  %1915 = vst [vmem:[%s1831 + $0xa4] sm:$0xf] %v1914
                  %v1916 = vld [vmem:[%s1830 + $0xa8] sm:$0xf]
                  %1917 = vst [vmem:[%s1831 + $0xa8] sm:$0xf] %v1916
                  %v1918 = vld [vmem:[%s1830 + $0xac] sm:$0xf]
                  %1919 = vst [vmem:[%s1831 + $0xac] sm:$0xf] %v1918
                  %v1920 = vld [vmem:[%s1830 + $0xb0] sm:$0xf]
                  %1921 = vst [vmem:[%s1831 + $0xb0] sm:$0xf] %v1920
                  %v1922 = vld [vmem:[%s1830 + $0xb4] sm:$0xf]
                  %1923 = vst [vmem:[%s1831 + $0xb4] sm:$0xf] %v1922
                  %v1924 = vld [vmem:[%s1830 + $0xb8] sm:$0xf]
                  %1925 = vst [vmem:[%s1831 + $0xb8] sm:$0xf] %v1924
                  %v1926 = vld [vmem:[%s1830 + $0xbc] sm:$0xf]
                  %1927 = vst [vmem:[%s1831 + $0xbc] sm:$0xf] %v1926
                  %v1928 = vld [vmem:[%s1830 + $0xc0] sm:$0xf]
                  %1929 = vst [vmem:[%s1831 + $0xc0] sm:$0xf] %v1928
                  %v1930 = vld [vmem:[%s1830 + $0xc4] sm:$0xf]
                  %1931 = vst [vmem:[%s1831 + $0xc4] sm:$0xf] %v1930
                  %v1932 = vld [vmem:[%s1830 + $0xc8] sm:$0xf]
                  %1933 = vst [vmem:[%s1831 + $0xc8] sm:$0xf] %v1932
                  %v1934 = vld [vmem:[%s1830 + $0xcc] sm:$0xf]
                  %1935 = vst [vmem:[%s1831 + $0xcc] sm:$0xf] %v1934
                  %v1936 = vld [vmem:[%s1830 + $0xd0] sm:$0xf]
                  %1937 = vst [vmem:[%s1831 + $0xd0] sm:$0xf] %v1936
                  %v1938 = vld [vmem:[%s1830 + $0xd4] sm:$0xf]
                  %1939 = vst [vmem:[%s1831 + $0xd4] sm:$0xf] %v1938
                  %v1940 = vld [vmem:[%s1830 + $0xd8] sm:$0xf]
                  %1941 = vst [vmem:[%s1831 + $0xd8] sm:$0xf] %v1940
                  %v1942 = vld [vmem:[%s1830 + $0xdc] sm:$0xf]
                  %1943 = vst [vmem:[%s1831 + $0xdc] sm:$0xf] %v1942
                  %v1944 = vld [vmem:[%s1830 + $0xe0] sm:$0xf]
                  %1945 = vst [vmem:[%s1831 + $0xe0] sm:$0xf] %v1944
                  %v1946 = vld [vmem:[%s1830 + $0xe4] sm:$0xf]
                  %1947 = vst [vmem:[%s1831 + $0xe4] sm:$0xf] %v1946
                  %v1948 = vld [vmem:[%s1830 + $0xe8] sm:$0xf]
                  %1949 = vst [vmem:[%s1831 + $0xe8] sm:$0xf] %v1948
                  %v1950 = vld [vmem:[%s1830 + $0xec] sm:$0xf]
                  %1951 = vst [vmem:[%s1831 + $0xec] sm:$0xf] %v1950
                  %v1952 = vld [vmem:[%s1830 + $0xf0] sm:$0xf]
                  %1953 = vst [vmem:[%s1831 + $0xf0] sm:$0xf] %v1952
                  %v1954 = vld [vmem:[%s1830 + $0xf4] sm:$0xf]
                  %1955 = vst [vmem:[%s1831 + $0xf4] sm:$0xf] %v1954
                  %v1956 = vld [vmem:[%s1830 + $0xf8] sm:$0xf]
                  %1957 = vst [vmem:[%s1831 + $0xf8] sm:$0xf] %v1956
                  %v1958 = vld [vmem:[%s1830 + $0xfc] sm:$0xf]
                  %1959 = vst [vmem:[%s1831 + $0xfc] sm:$0xf] %v1958
                  %s1960 = sadd.s32 1, %s1829
                  %p1961 = scmp.ge.s32.totalorder %s1960, %s1822
                  %s1962 = scalar_select %p1961, 0, %s1960
                  %s1963 = smul.u32 %s1962, 256
                  %s1964 = smul.u32 %s1962, 256
                  %s1965 = scalar_lea.vmem %s1628, %s1963 [#allocation3]
                  %s1966 = scalar_lea.vmem %s1640, %s1964
                $region79: #{tpu_custom_call.1} parent=73 // loop_footer
                  %s1826 = sadd.s32 %s1824, 1
                $region80: #{tpu_custom_call.1} parent=73 // loop_footer_branch
                  %1823 = sbr.rel target = $region76
                $region81: #{tpu_custom_call.1} parent=73 // loop_exit
                  _
                %s1967 = sshrl.u32 %s1635, 6
                %s1968 = sand.u32 %s1635, 63
                %s1969 = smul.u32 %s1967, 64
                %s1970 = smul.u32 4, %s1969
                %s1971 = scalar_lea.vmem %s1628, %s1970 [#allocation3]
                %s1972 = smul.u32 4, %s1969
                %s1973 = scalar_lea.vmem %s1640, %s1972
                // While loop
                $region82: #{tpu_custom_call.1} parent=73 // loop_pre_header
                  _
                $region83: #{tpu_custom_call.1} parent=73 // loop_header
                  %s1975 = sphi 0, %s1977
                  %p1976 = scmp.ge.s32.totalorder %s1975, %s1968
                  %s1980 = sphi 0, %s1987
                  %s1981 = sphi %s1971, %s1990
                  %s1982 = sphi %s1973, %s1991
                $region84: #{tpu_custom_call.1} parent=73 // loop_header_branch
                  %1979 = sbr.rel (%p1976) target = $region88
                $region85: #{tpu_custom_call.1} parent=73 // loop_body
                  %v1983 = vld [vmem:[%s1981] sm:$0xf]
                  %1984 = vst [vmem:[%s1982] sm:$0xf] %v1983
                  %s1985 = sadd.s32 1, %s1980
                  %p1986 = scmp.ge.s32.totalorder %s1985, %s1968
                  %s1987 = scalar_select %p1986, 0, %s1985
                  %s1988 = smul.u32 %s1987, 4
                  %s1989 = smul.u32 %s1987, 4
                  %s1990 = scalar_lea.vmem %s1971, %s1988 [#allocation3]
                  %s1991 = scalar_lea.vmem %s1973, %s1989
                $region86: #{tpu_custom_call.1} parent=73 // loop_footer
                  %s1977 = sadd.s32 %s1975, 1
                $region87: #{tpu_custom_call.1} parent=73 // loop_footer_branch
                  %1974 = sbr.rel target = $region83
                $region88: #{tpu_custom_call.1} parent=73 // loop_exit
                  _
              $region74: #{tpu_custom_call.1} parent=51 // pred_fallthru
                _
            $region52: #{tpu_custom_call.1} parent=47 // pred_fallthru
              _
            // Predicated region
            $region53: #{tpu_custom_call.1} parent=47 // pred_check
              _
            $region54: #{tpu_custom_call.1} parent=47 // pred_check_branch
              %1647 = sbr.rel (0) target = $region56
            $region55: #{tpu_custom_call.1} parent=47 // pred_region
              %s1649 = sshrl.u32 %s1635, 6
              // While loop
              $region57: #{tpu_custom_call.1} parent=55 // loop_pre_header
                _
              $region58: #{tpu_custom_call.1} parent=55 // loop_header
                %s1651 = sphi 0, %s1653
                %p1652 = scmp.ge.s32.totalorder %s1651, %s1649
                %s1656 = sphi 0, %s1789
                %s1657 = sphi %s1628, %s1792
                %s1658 = sphi %s1640, %s1793
              $region59: #{tpu_custom_call.1} parent=55 // loop_header_branch
                %1655 = sbr.rel (%p1652) target = $region63
              $region60: #{tpu_custom_call.1} parent=55 // loop_body
                %v1659 = vld [vmem:[%s1657] sm:$0xf]
                %1660 = vst [vmem:[%s1658] sm:$0xf] %v1659
                %v1661 = vld [vmem:[%s1657 + $0x4] sm:$0xf]
                %1662 = vst [vmem:[%s1658 + $0x4] sm:$0xf] %v1661
                %v1663 = vld [vmem:[%s1657 + $0x8] sm:$0xf]
                %1664 = vst [vmem:[%s1658 + $0x8] sm:$0xf] %v1663
                %v1665 = vld [vmem:[%s1657 + $0xc] sm:$0xf]
                %1666 = vst [vmem:[%s1658 + $0xc] sm:$0xf] %v1665
                %v1667 = vld [vmem:[%s1657 + $0x10] sm:$0xf]
                %1668 = vst [vmem:[%s1658 + $0x10] sm:$0xf] %v1667
                %v1669 = vld [vmem:[%s1657 + $0x14] sm:$0xf]
                %1670 = vst [vmem:[%s1658 + $0x14] sm:$0xf] %v1669
                %v1671 = vld [vmem:[%s1657 + $0x18] sm:$0xf]
                %1672 = vst [vmem:[%s1658 + $0x18] sm:$0xf] %v1671
                %v1673 = vld [vmem:[%s1657 + $0x1c] sm:$0xf]
                %1674 = vst [vmem:[%s1658 + $0x1c] sm:$0xf] %v1673
                %v1675 = vld [vmem:[%s1657 + $0x20] sm:$0xf]
                %1676 = vst [vmem:[%s1658 + $0x20] sm:$0xf] %v1675
                %v1677 = vld [vmem:[%s1657 + $0x24] sm:$0xf]
                %1678 = vst [vmem:[%s1658 + $0x24] sm:$0xf] %v1677
                %v1679 = vld [vmem:[%s1657 + $0x28] sm:$0xf]
                %1680 = vst [vmem:[%s1658 + $0x28] sm:$0xf] %v1679
                %v1681 = vld [vmem:[%s1657 + $0x2c] sm:$0xf]
                %1682 = vst [vmem:[%s1658 + $0x2c] sm:$0xf] %v1681
                %v1683 = vld [vmem:[%s1657 + $0x30] sm:$0xf]
                %1684 = vst [vmem:[%s1658 + $0x30] sm:$0xf] %v1683
                %v1685 = vld [vmem:[%s1657 + $0x34] sm:$0xf]
                %1686 = vst [vmem:[%s1658 + $0x34] sm:$0xf] %v1685
                %v1687 = vld [vmem:[%s1657 + $0x38] sm:$0xf]
                %1688 = vst [vmem:[%s1658 + $0x38] sm:$0xf] %v1687
                %v1689 = vld [vmem:[%s1657 + $0x3c] sm:$0xf]
                %1690 = vst [vmem:[%s1658 + $0x3c] sm:$0xf] %v1689
                %v1691 = vld [vmem:[%s1657 + $0x40] sm:$0xf]
                %1692 = vst [vmem:[%s1658 + $0x40] sm:$0xf] %v1691
                %v1693 = vld [vmem:[%s1657 + $0x44] sm:$0xf]
                %1694 = vst [vmem:[%s1658 + $0x44] sm:$0xf] %v1693
                %v1695 = vld [vmem:[%s1657 + $0x48] sm:$0xf]
                %1696 = vst [vmem:[%s1658 + $0x48] sm:$0xf] %v1695
                %v1697 = vld [vmem:[%s1657 + $0x4c] sm:$0xf]
                %1698 = vst [vmem:[%s1658 + $0x4c] sm:$0xf] %v1697
                %v1699 = vld [vmem:[%s1657 + $0x50] sm:$0xf]
                %1700 = vst [vmem:[%s1658 + $0x50] sm:$0xf] %v1699
                %v1701 = vld [vmem:[%s1657 + $0x54] sm:$0xf]
                %1702 = vst [vmem:[%s1658 + $0x54] sm:$0xf] %v1701
                %v1703 = vld [vmem:[%s1657 + $0x58] sm:$0xf]
                %1704 = vst [vmem:[%s1658 + $0x58] sm:$0xf] %v1703
                %v1705 = vld [vmem:[%s1657 + $0x5c] sm:$0xf]
                %1706 = vst [vmem:[%s1658 + $0x5c] sm:$0xf] %v1705
                %v1707 = vld [vmem:[%s1657 + $0x60] sm:$0xf]
                %1708 = vst [vmem:[%s1658 + $0x60] sm:$0xf] %v1707
                %v1709 = vld [vmem:[%s1657 + $0x64] sm:$0xf]
                %1710 = vst [vmem:[%s1658 + $0x64] sm:$0xf] %v1709
                %v1711 = vld [vmem:[%s1657 + $0x68] sm:$0xf]
                %1712 = vst [vmem:[%s1658 + $0x68] sm:$0xf] %v1711
                %v1713 = vld [vmem:[%s1657 + $0x6c] sm:$0xf]
                %1714 = vst [vmem:[%s1658 + $0x6c] sm:$0xf] %v1713
                %v1715 = vld [vmem:[%s1657 + $0x70] sm:$0xf]
                %1716 = vst [vmem:[%s1658 + $0x70] sm:$0xf] %v1715
                %v1717 = vld [vmem:[%s1657 + $0x74] sm:$0xf]
                %1718 = vst [vmem:[%s1658 + $0x74] sm:$0xf] %v1717
                %v1719 = vld [vmem:[%s1657 + $0x78] sm:$0xf]
                %1720 = vst [vmem:[%s1658 + $0x78] sm:$0xf] %v1719
                %v1721 = vld [vmem:[%s1657 + $0x7c] sm:$0xf]
                %1722 = vst [vmem:[%s1658 + $0x7c] sm:$0xf] %v1721
                %v1723 = vld [vmem:[%s1657 + $0x80] sm:$0xf]
                %1724 = vst [vmem:[%s1658 + $0x80] sm:$0xf] %v1723
                %v1725 = vld [vmem:[%s1657 + $0x84] sm:$0xf]
                %1726 = vst [vmem:[%s1658 + $0x84] sm:$0xf] %v1725
                %v1727 = vld [vmem:[%s1657 + $0x88] sm:$0xf]
                %1728 = vst [vmem:[%s1658 + $0x88] sm:$0xf] %v1727
                %v1729 = vld [vmem:[%s1657 + $0x8c] sm:$0xf]
                %1730 = vst [vmem:[%s1658 + $0x8c] sm:$0xf] %v1729
                %v1731 = vld [vmem:[%s1657 + $0x90] sm:$0xf]
                %1732 = vst [vmem:[%s1658 + $0x90] sm:$0xf] %v1731
                %v1733 = vld [vmem:[%s1657 + $0x94] sm:$0xf]
                %1734 = vst [vmem:[%s1658 + $0x94] sm:$0xf] %v1733
                %v1735 = vld [vmem:[%s1657 + $0x98] sm:$0xf]
                %1736 = vst [vmem:[%s1658 + $0x98] sm:$0xf] %v1735
                %v1737 = vld [vmem:[%s1657 + $0x9c] sm:$0xf]
                %1738 = vst [vmem:[%s1658 + $0x9c] sm:$0xf] %v1737
                %v1739 = vld [vmem:[%s1657 + $0xa0] sm:$0xf]
                %1740 = vst [vmem:[%s1658 + $0xa0] sm:$0xf] %v1739
                %v1741 = vld [vmem:[%s1657 + $0xa4] sm:$0xf]
                %1742 = vst [vmem:[%s1658 + $0xa4] sm:$0xf] %v1741
                %v1743 = vld [vmem:[%s1657 + $0xa8] sm:$0xf]
                %1744 = vst [vmem:[%s1658 + $0xa8] sm:$0xf] %v1743
                %v1745 = vld [vmem:[%s1657 + $0xac] sm:$0xf]
                %1746 = vst [vmem:[%s1658 + $0xac] sm:$0xf] %v1745
                %v1747 = vld [vmem:[%s1657 + $0xb0] sm:$0xf]
                %1748 = vst [vmem:[%s1658 + $0xb0] sm:$0xf] %v1747
                %v1749 = vld [vmem:[%s1657 + $0xb4] sm:$0xf]
                %1750 = vst [vmem:[%s1658 + $0xb4] sm:$0xf] %v1749
                %v1751 = vld [vmem:[%s1657 + $0xb8] sm:$0xf]
                %1752 = vst [vmem:[%s1658 + $0xb8] sm:$0xf] %v1751
                %v1753 = vld [vmem:[%s1657 + $0xbc] sm:$0xf]
                %1754 = vst [vmem:[%s1658 + $0xbc] sm:$0xf] %v1753
                %v1755 = vld [vmem:[%s1657 + $0xc0] sm:$0xf]
                %1756 = vst [vmem:[%s1658 + $0xc0] sm:$0xf] %v1755
                %v1757 = vld [vmem:[%s1657 + $0xc4] sm:$0xf]
                %1758 = vst [vmem:[%s1658 + $0xc4] sm:$0xf] %v1757
                %v1759 = vld [vmem:[%s1657 + $0xc8] sm:$0xf]
                %1760 = vst [vmem:[%s1658 + $0xc8] sm:$0xf] %v1759
                %v1761 = vld [vmem:[%s1657 + $0xcc] sm:$0xf]
                %1762 = vst [vmem:[%s1658 + $0xcc] sm:$0xf] %v1761
                %v1763 = vld [vmem:[%s1657 + $0xd0] sm:$0xf]
                %1764 = vst [vmem:[%s1658 + $0xd0] sm:$0xf] %v1763
                %v1765 = vld [vmem:[%s1657 + $0xd4] sm:$0xf]
                %1766 = vst [vmem:[%s1658 + $0xd4] sm:$0xf] %v1765
                %v1767 = vld [vmem:[%s1657 + $0xd8] sm:$0xf]
                %1768 = vst [vmem:[%s1658 + $0xd8] sm:$0xf] %v1767
                %v1769 = vld [vmem:[%s1657 + $0xdc] sm:$0xf]
                %1770 = vst [vmem:[%s1658 + $0xdc] sm:$0xf] %v1769
                %v1771 = vld [vmem:[%s1657 + $0xe0] sm:$0xf]
                %1772 = vst [vmem:[%s1658 + $0xe0] sm:$0xf] %v1771
                %v1773 = vld [vmem:[%s1657 + $0xe4] sm:$0xf]
                %1774 = vst [vmem:[%s1658 + $0xe4] sm:$0xf] %v1773
                %v1775 = vld [vmem:[%s1657 + $0xe8] sm:$0xf]
                %1776 = vst [vmem:[%s1658 + $0xe8] sm:$0xf] %v1775
                %v1777 = vld [vmem:[%s1657 + $0xec] sm:$0xf]
                %1778 = vst [vmem:[%s1658 + $0xec] sm:$0xf] %v1777
                %v1779 = vld [vmem:[%s1657 + $0xf0] sm:$0xf]
                %1780 = vst [vmem:[%s1658 + $0xf0] sm:$0xf] %v1779
                %v1781 = vld [vmem:[%s1657 + $0xf4] sm:$0xf]
                %1782 = vst [vmem:[%s1658 + $0xf4] sm:$0xf] %v1781
                %v1783 = vld [vmem:[%s1657 + $0xf8] sm:$0xf]
                %1784 = vst [vmem:[%s1658 + $0xf8] sm:$0xf] %v1783
                %v1785 = vld [vmem:[%s1657 + $0xfc] sm:$0xf]
                %1786 = vst [vmem:[%s1658 + $0xfc] sm:$0xf] %v1785
                %s1787 = sadd.s32 1, %s1656
                %p1788 = scmp.ge.s32.totalorder %s1787, %s1649
                %s1789 = scalar_select %p1788, 0, %s1787
                %s1790 = smul.u32 %s1789, 256
                %s1791 = smul.u32 %s1789, 256
                %s1792 = scalar_lea.vmem %s1628, %s1790 [#allocation3]
                %s1793 = scalar_lea.vmem %s1640, %s1791
              $region61: #{tpu_custom_call.1} parent=55 // loop_footer
                %s1653 = sadd.s32 %s1651, 1
              $region62: #{tpu_custom_call.1} parent=55 // loop_footer_branch
                %1650 = sbr.rel target = $region58
              $region63: #{tpu_custom_call.1} parent=55 // loop_exit
                _
              %s1794 = sshrl.u32 %s1635, 6
              %s1795 = sand.u32 %s1635, 63
              %s1796 = smul.u32 %s1794, 64
              %s1797 = smul.u32 4, %s1796
              %s1798 = scalar_lea.vmem %s1628, %s1797 [#allocation3]
              %s1799 = smul.u32 4, %s1796
              %s1800 = scalar_lea.vmem %s1640, %s1799
              // While loop
              $region64: #{tpu_custom_call.1} parent=55 // loop_pre_header
                _
              $region65: #{tpu_custom_call.1} parent=55 // loop_header
                %s1802 = sphi 0, %s1804
                %p1803 = scmp.ge.s32.totalorder %s1802, %s1795
                %s1807 = sphi 0, %s1814
                %s1808 = sphi %s1798, %s1817
                %s1809 = sphi %s1800, %s1818
              $region66: #{tpu_custom_call.1} parent=55 // loop_header_branch
                %1806 = sbr.rel (%p1803) target = $region70
              $region67: #{tpu_custom_call.1} parent=55 // loop_body
                %v1810 = vld [vmem:[%s1808] sm:$0xf]
                %1811 = vst [vmem:[%s1809] sm:$0xf] %v1810
                %s1812 = sadd.s32 1, %s1807
                %p1813 = scmp.ge.s32.totalorder %s1812, %s1795
                %s1814 = scalar_select %p1813, 0, %s1812
                %s1815 = smul.u32 %s1814, 4
                %s1816 = smul.u32 %s1814, 4
                %s1817 = scalar_lea.vmem %s1798, %s1815 [#allocation3]
                %s1818 = scalar_lea.vmem %s1800, %s1816
              $region68: #{tpu_custom_call.1} parent=55 // loop_footer
                %s1804 = sadd.s32 %s1802, 1
              $region69: #{tpu_custom_call.1} parent=55 // loop_footer_branch
                %1801 = sbr.rel target = $region65
              $region70: #{tpu_custom_call.1} parent=55 // loop_exit
                _
            $region56: #{tpu_custom_call.1} parent=47 // pred_fallthru
              _
          $region48: #{tpu_custom_call.1} parent=43 // pred_fallthru
            _
          %1992 = vnop
        $region44: #{tpu_custom_call.1} parent=31 // pred_fallthru
          _
      $region32: #{tpu_custom_call.1} parent=5 // pred_fallthru
        _
      %p1993 = scmp.le.s32.totalorder 2, %s9
      // Predicated region
      $region89: #{tpu_custom_call.1} parent=5 // pred_check
        %p1994 = pneg %p1993
      $region90: #{tpu_custom_call.1} parent=5 // pred_check_branch
        %1996 = sbr.rel (%p1994) target = $region92
      $region91: #{tpu_custom_call.1} parent=5 // pred_region
        %s1997 = ssub.s32 %s9, 2
        // Predicated region
        $region93: #{tpu_custom_call.1} parent=91 // pred_check
          %p1998 = pneg %p141
        $region94: #{tpu_custom_call.1} parent=91 // pred_check_branch
          %2000 = sbr.rel (%p1998) target = $region96
        $region95: #{tpu_custom_call.1} parent=91 // pred_region
          %s2001 = sand.u32 %s126, 1
          %s2002 = sand.u32 %s126, 1
          %s2003 = smul.addr %s2002, 256
          %s2004 = scalar_lea.vmem [#allocation3], %s2003
        $region96: #{tpu_custom_call.1} parent=91 // pred_fallthru
          _
      $region92: #{tpu_custom_call.1} parent=5 // pred_fallthru
        _
    $region6: #{tpu_custom_call.1} parent=1 // loop_footer
      %s13 = sadd.s32 1, %s9
    $region7: #{tpu_custom_call.1} parent=1 // loop_footer_branch
      %8 = sbr.rel target = $region3
    $region8: #{tpu_custom_call.1} parent=1 // loop_exit
      _

</llo_original>
